<compile_context>
chip_gen: v6e
topology: v6e:2x2x1
jax: 0.10.0
libtpu: 0.0.40
codegen_flags: <defaults>
</compile_context>

<pallas_src>
import functools
import math

import numpy as np
import jax
import jax.numpy as jnp
from jax import lax
from jax.experimental import pallas as pl
from jax.experimental.pallas import tpu as pltpu


def _round_up(x, m):
    return ((x + m - 1) // m) * m


def _auto_vmem_limit():
    """Generation-aware VMEM budget: capacity minus headroom, capped.

    v7x (64 MiB phys) -> ~52 MiB; v5e/v6e (128 MiB phys) -> 112 MiB.
    """
    try:
        cap = int(pltpu.get_tpu_info().vmem_capacity_bytes)
        return max(32 * 1024 * 1024, min(cap - 12 * 1024 * 1024, 112 * 1024 * 1024))
    except Exception:
        return 48 * 1024 * 1024


# ----------------------------------------------------------------------------
# Kernel
# ----------------------------------------------------------------------------
def _spec_ffn_kernel(num_layers, prec_mz_offset, out_size, out_size_padded,
                     x_ref, idxcol_ref, *refs):
    """One batch tile per grid step.

    x_ref      : (tb, input_size) f32 input block.
    idxcol_ref : (tb, 1) int32 precursor bin indices for this tile.
    refs       : packed params..., out_ref (tb, Np).
    """
    N, Np = out_size, out_size_padded
    out_ref = refs[-1]
    prm = refs[:-1]
    tb = out_ref.shape[0]

    def mm(a, w_ref):
        w = w_ref[...]
        # Cast activation to the weight dtype (bf16 on MXU-native configs),
        # accumulate in f32 on the MXU.
        return jnp.dot(a.astype(w.dtype), w, preferred_element_type=jnp.float32)

    # in_layer
    fh = mm(x_ref[...], prm[0]) + prm[1][...]

    # NeimsBlocks (BatchNorm folded to scale/shift; Dropout = identity in eval mode)
    p = 2
    for _ in range(num_layers):
        s1, t1, w1, b1, s2, t2, w2, b2 = prm[p:p + 8]
        p += 8
        h = fh * s1[...] + t1[...]
        h = jnp.where(h >= 0.0, h, 0.01 * h)          # LeakyReLU
        h = mm(h, w1) + b1[...]
        h = h * s2[...] + t2[...]
        h = jnp.where(h >= 0.0, h, 0.01 * h)
        h = mm(h, w2) + b2[...]
        fh = fh + h                                   # use_residuals=True

    # Fused output heads: [forw | rev(pre-flipped cols) | gate] in one MXU matmul.
    # TODO(synk): at production sizes (hidden ~2k, Np in the thousands) stream this
    # weight over the hidden (K) dim with pltpu.emit_pipeline instead of keeping it
    # fully resident; do NOT tile Np (the roll and the L1 row-sum need the full row).
    heads = mm(fh, prm[p]) + prm[p + 1][...]          # (tb, 3*Np) f32
    ff = heads[:, 0:Np]
    rr_rev = heads[:, Np:2 * Np]                      # lane-reversed rev head
    fg = jax.nn.sigmoid(heads[:, 2 * Np:3 * Np])

    # reverse_prediction.  With the lane flip folded into the weights,
    #   fr[b, j] = rr_rev[b, j + N - offset_b]   for every lane that survives the
    # mass mask, i.e. a per-row circular right-roll by (Np - N + offset_b) mod Np of
    # the padded row.  Barrel shifter: log2(Np) static XLU rolls + per-row VPU selects.
    idx = idxcol_ref[...]                             # (tb, 1) int32
    offset_b = jnp.minimum(idx + prec_mz_offset + 1, N)
    rshift_raw = (Np - N) + offset_b                  # in [Np-N+1, Np]
    rshift = jnp.where(rshift_raw == Np, 0, rshift_raw)
    fr = rr_rev
    for k in range((Np - 1).bit_length()):
        bit = (rshift >> k) & 1
        fr = jnp.where(bit == 1, pltpu.roll(fr, 1 << k, axis=1), fr)

    fo = ff * fg + fr * (1.0 - fg)

    # mask_prediction_by_mass (also zeroes the Np-N padded lanes) + ReLU
    lane = lax.broadcasted_iota(jnp.int32, (tb, Np), 1)
    keep = lane <= jnp.minimum(idx + prec_mz_offset, N - 1)
    fo = jnp.maximum(jnp.where(keep, fo, 0.0), 0.0)

    # L1 normalization (F.normalize(p=1, dim=1))
    denom = jnp.maximum(jnp.sum(fo, axis=1, keepdims=True), 1e-12)
    spec = fo / denom

    # all-zero bonus: if a row is all zeros, put 1.0 in bin 0
    row_max = jnp.max(spec, axis=1, keepdims=True)
    spec = spec + jnp.where((row_max <= 0.0) & (lane == 0), 1.0, 0.0)

    out_ref[...] = spec


# ----------------------------------------------------------------------------
# Wrapper
# ----------------------------------------------------------------------------
def prec_mz_to_idx(prec_mz, mz_bins, mz_max, mz_bin_res):
    # torch.bucketize(..., right=True) == searchsorted(side='right')
    clamped = jnp.clip(prec_mz, 0.0, mz_max - mz_bin_res)
    return jnp.searchsorted(mz_bins, clamped, side='right').astype(jnp.int32)


def spec_ffn_pallas(input_h, prec_mz, packed_params, *, mz_bins, mz_max,
                    mz_bin_res, num_layers, prec_mz_offset, block_b=128,
                    vmem_limit_bytes=None):
    """Dense spectrum forward pass. Returns (B, output_size) f32.

    block_b (multiple of 8): batch tile.  Production guidance: 256 on v6e and on
    v7x (after confirming VMEM residency under the v7x budget), 128 on v5e.
    """
    B, input_size = input_h.shape
    N = int(mz_bins.shape[0])                      # real output_size
    Np = int(packed_params[-2].shape[1]) // 3      # lane-padded output size

    prec_idx = prec_mz_to_idx(prec_mz, mz_bins, mz_max, mz_bin_res)

    assert block_b % 8 == 0
    tb = min(block_b, _round_up(B, 8))
    Bp = _round_up(B, tb)
    if Bp != B:
        input_h = jnp.pad(input_h, ((0, Bp - B), (0, 0)))
        prec_idx = jnp.pad(prec_idx, (0, Bp - B))
    idx_col = prec_idx.reshape(Bp, 1)

    kernel = functools.partial(_spec_ffn_kernel, num_layers, prec_mz_offset, N, Np)

    # Resident weights / folded-BN / biases: constant block index -> no re-DMA;
    # single-buffered to halve their VMEM footprint (critical on v7x's 64 MiB).
    def resident_spec(shape):
        return pl.BlockSpec(shape, lambda i: (0, 0), pipeline_mode=pl.Buffered(1))

    grid_spec = pltpu.PrefetchScalarGridSpec(
        num_scalar_prefetch=0,
        grid=(Bp // tb,),
        in_specs=([pl.BlockSpec((tb, input_size), lambda i: (i, 0)),
                   pl.BlockSpec((tb, 1), lambda i: (i, 0))]
                  + [resident_spec(p.shape) for p in packed_params]),
        out_specs=pl.BlockSpec((tb, Np), lambda i: (i, 0)),
    )

    # Advisory cost hint for the XLA scheduler.
    mm_w = ([packed_params[0]]
            + [packed_params[2 + 8 * l + off]
               for l in range(num_layers) for off in (2, 6)]
            + [packed_params[-2]])
    flops = 2 * Bp * sum(int(w.shape[0]) * int(w.shape[1]) for w in mm_w)
    bytes_accessed = int(sum(int(np.prod(p.shape)) * p.dtype.itemsize
                             for p in packed_params)
                         + input_h.size * 4 + idx_col.size * 4 + Bp * Np * 4)
    cost = pl.CostEstimate(flops=flops, transcendentals=int(Bp * Np),
                           bytes_accessed=bytes_accessed)

    if vmem_limit_bytes is None:
        vmem_limit_bytes = _auto_vmem_limit()

    out = pl.pallas_call(
        kernel,
        out_shape=jax.ShapeDtypeStruct((Bp, Np), jnp.float32),
        grid_spec=grid_spec,
        cost_estimate=cost,
        compiler_params=pltpu.CompilerParams(
            dimension_semantics=("parallel",),     # independent batch tiles
            vmem_limit_bytes=int(vmem_limit_bytes)),
    )(input_h, idx_col, *packed_params)
    return out[:B, :N]


# ----------------------------------------------------------------------------
# Parameter construction / packing
# ----------------------------------------------------------------------------
def make_raw_params(key, input_size, hidden_size, output_size, num_layers):
    """Deterministic synthetic parameters matching SpecFFN.__init__ shapes
    (nn.Linear weights stored (out, in) like PyTorch, BN running stats included)."""
    bottleneck = int(round(0.5 * hidden_size))
    keys = iter(jax.random.split(key, 256))

    def linear(in_dim, out_dim):
        bound = 1.0 / math.sqrt(in_dim)
        w = jax.random.uniform(next(keys), (out_dim, in_dim), jnp.float32, -bound, bound)
        b = jax.random.uniform(next(keys), (out_dim,), jnp.float32, -bound, bound)
        return w, b

    def bn(dim):
        gamma = 1.0 + 0.1 * jax.random.normal(next(keys), (dim,), jnp.float32)
        beta = 0.1 * jax.random.normal(next(keys), (dim,), jnp.float32)
        mean = 0.1 * jax.random.normal(next(keys), (dim,), jnp.float32)
        var = 1.0 + 0.1 * jnp.abs(jax.random.normal(next(keys), (dim,), jnp.float32))
        return gamma, beta, mean, var

    raw = {}
    raw['in_w'], raw['in_b'] = linear(input_size, hidden_size)
    raw['blocks'] = []
    for _ in range(num_layers):
        blk = {}
        blk['bn1'] = bn(hidden_size)
        blk['w1'], blk['b1'] = linear(hidden_size, bottleneck)
        blk['bn2'] = bn(bottleneck)
        blk['w2'], blk['b2'] = linear(bottleneck, hidden_size)
        raw['blocks'].append(blk)
    raw['forw_w'], raw['forw_b'] = linear(hidden_size, output_size)
    raw['rev_w'], raw['rev_b'] = linear(hidden_size, output_size)
    raw['gate_w'], raw['gate_b'] = linear(hidden_size, output_size)
    return raw


def pack_params(raw, matmul_dtype=jnp.float32, lane_pad=128):
    """Fold BN into scale/shift, transpose weights to (in, out), zero-pad hidden /
    bottleneck / output dims up to multiples of `lane_pad` (MXU/lane density),
    pre-flip the rev-head columns (so the kernel only needs a per-row roll), fuse
    the three heads into one (Hp, 3*Np) weight, and cast matmul weights to
    `matmul_dtype` (bf16 recommended on v5e/v6e/v7x; MXU is bf16-native)."""
    def fold(bn_params):
        gamma, beta, mean, var = bn_params
        s = gamma / jnp.sqrt(var + 1e-5)
        t = beta - mean * s
        return s, t

    def pad_mat(w, rows, cols):
        return jnp.pad(w, ((0, rows - w.shape[0]), (0, cols - w.shape[1])))

    def pad_vec(v, cols, value=0.0):
        return jnp.pad(v, (0, cols - v.shape[0]), constant_values=value).reshape(1, -1)

    H = raw['in_w'].shape[0]
    in_dim = raw['in_w'].shape[1]
    N = raw['forw_w'].shape[0]
    Hp = _round_up(H, lane_pad)
    Np = _round_up(N, lane_pad)

    params = [pad_mat(raw['in_w'].T, in_dim, Hp).astype(matmul_dtype),
              pad_vec(raw['in_b'], Hp)]
    for blk in raw['blocks']:
        Bk = blk['w1'].shape[0]
        Bkp = _round_up(Bk, lane_pad)
        s1, t1 = fold(blk['bn1'])
        s2, t2 = fold(blk['bn2'])
        params += [pad_vec(s1, Hp, 1.0), pad_vec(t1, Hp),
                   pad_mat(blk['w1'].T, Hp, Bkp).astype(matmul_dtype),
                   pad_vec(blk['b1'], Bkp),
                   pad_vec(s2, Bkp, 1.0), pad_vec(t2, Bkp),
                   pad_mat(blk['w2'].T, Bkp, Hp).astype(matmul_dtype),
                   pad_vec(blk['b2'], Hp)]
    wf = pad_mat(raw['forw_w'].T, Hp, Np)
    wr = pad_mat(raw['rev_w'].T[:, ::-1], Hp, Np)    # pre-flip rev head over real N
    wg = pad_mat(raw['gate_w'].T, Hp, Np)
    bf = pad_vec(raw['forw_b'], Np)
    br = pad_vec(raw['rev_b'][::-1], Np)
    bg = pad_vec(raw['gate_b'], Np)
    params += [jnp.concatenate([wf, wr, wg], axis=1).astype(matmul_dtype),
               jnp.concatenate([bf, br, bg], axis=1)]
    return params


# ----------------------------------------------------------------------------
# Pure-JAX reference following the PyTorch module literally (eval mode, f32)
# ----------------------------------------------------------------------------
def ref_spec_ffn(input_h, prec_mz, raw, *, num_layers, prec_mz_offset,
                 mz_bins, mz_max, mz_bin_res):
    P = jax.lax.Precision.HIGHEST
    N = int(mz_bins.shape[0])
    idx = prec_mz_to_idx(prec_mz, mz_bins, mz_max, mz_bin_res)

    def lin(h, w, b):
        return jnp.dot(h, w.T, precision=P) + b

    def bnorm(h, p):
        gamma, beta, mean, var = p
        return (h - mean) / jnp.sqrt(var + 1e-5) * gamma + beta

    lrelu = lambda h: jnp.where(h >= 0.0, h, 0.01 * h)

    fh = lin(input_h, raw['in_w'], raw['in_b'])
    for blk in raw['blocks']:
        h = lrelu(bnorm(fh, blk['bn1']))
        h = lin(h, blk['w1'], blk['b1'])
        h = lrelu(bnorm(h, blk['bn2']))
        h = lin(h, blk['w2'], blk['b2'])
        fh = fh + h

    ff = lin(fh, raw['forw_w'], raw['forw_b'])
    rr = lin(fh, raw['rev_w'], raw['rev_b'])
    fg = jax.nn.sigmoid(lin(fh, raw['gate_w'], raw['gate_b']))

    # reverse_prediction (flip + modular gather, exactly like the PyTorch code)
    rev = rr[:, ::-1]
    offset_idx = jnp.minimum(N, idx + prec_mz_offset + 1)
    shifts = -(N - offset_idx)
    gidx = (jnp.arange(N)[None, :] - shifts[:, None]) % N
    fr = jnp.take_along_axis(rev, gidx, axis=1)

    fo = ff * fg + fr * (1.0 - fg)
    mask = (jnp.arange(N)[None, :] <= idx[:, None] + prec_mz_offset).astype(jnp.float32)
    fo = jnp.maximum(mask * fo, 0.0)
    denom = jnp.maximum(fo.sum(axis=1, keepdims=True), 1e-12)
    spec = fo / denom
    zero_row = spec.max(axis=1, keepdims=True) <= 0.0
    bonus = jnp.where(zero_row & (jnp.arange(N)[None, :] == 0), 1.0, 0.0)
    return spec + bonus


# ----------------------------------------------------------------------------
if __name__ == "__main__":
    B = 16
    INPUT_SIZE = 32
    HIDDEN_SIZE = 64
    MZ_MAX = 128.0
    MZ_BIN_RES = 1.0
    NUM_LAYERS = 2
    PREC_MZ_OFFSET = 2
    BLOCK_B = 8          # small batch tile for the toy run (256 on v6e/v7x, 128 on v5e in prod)

    mz_bins = jnp.arange(MZ_BIN_RES, MZ_MAX + MZ_BIN_RES, MZ_BIN_RES, dtype=jnp.float32)
    mzs = mz_bins - 0.5 * MZ_BIN_RES
    OUTPUT_SIZE = int(mz_bins.shape[0])   # 128

    key = jax.random.PRNGKey(0)
    k_in, k_mz, k_p = jax.random.split(key, 3)
    input_h = jax.random.normal(k_in, (B, INPUT_SIZE), jnp.float32)
    prec_mz = jax.random.uniform(k_mz, (B,), jnp.float32, 5.0, 150.0)
    raw = make_raw_params(k_p, INPUT_SIZE, HIDDEN_SIZE, OUTPUT_SIZE, NUM_LAYERS)

    ref = ref_spec_ffn(input_h, prec_mz, raw, num_layers=NUM_LAYERS,
                       prec_mz_offset=PREC_MZ_OFFSET, mz_bins=mz_bins,
                       mz_max=MZ_MAX, mz_bin_res=MZ_BIN_RES)
    ref = jax.block_until_ready(ref)

    common = dict(mz_bins=mz_bins, mz_max=MZ_MAX, mz_bin_res=MZ_BIN_RES,
                  num_layers=NUM_LAYERS, prec_mz_offset=PREC_MZ_OFFSET,
                  block_b=BLOCK_B)

    # f32 matmul path (exact module semantics).
    spec_f32 = spec_ffn_pallas(input_h, prec_mz, pack_params(raw, jnp.float32), **common)
    spec_f32 = jax.block_until_ready(spec_f32)
    np.testing.assert_allclose(np.asarray(spec_f32), np.asarray(ref),
                               rtol=1e-3, atol=2e-5)

    # bf16 matmul operands (MXU-native), f32 accumulation / elementwise.
    spec_bf16 = spec_ffn_pallas(input_h, prec_mz, pack_params(raw, jnp.bfloat16), **common)
    spec_bf16 = jax.block_until_ready(spec_bf16)
    np.testing.assert_allclose(np.asarray(spec_bf16), np.asarray(ref),
                               rtol=7e-2, atol=3e-3)

    # Sparse (pred_mzs, pred_logprobs, pred_batch_idxs) outputs.
    # TODO(synk): boolean-mask extraction produces data-dependent (ragged) shapes,
    # which has no fixed-shape Pallas equivalent; done on host with numpy.
    spec_np = np.asarray(spec_f32)
    mask = spec_np > 0.0
    pred_mzs = np.broadcast_to(np.asarray(mzs)[None, :], spec_np.shape)[mask]
    pred_logprobs = np.log(np.clip(spec_np, 1e-9, None))[mask]   # safelog
    pred_batch_idxs = np.broadcast_to(np.arange(B)[:, None], spec_np.shape)[mask]
    assert pred_mzs.shape == pred_logprobs.shape == pred_batch_idxs.shape

    print("KERNEL_OK")
</pallas_src>

<mosaic_0001>
module attributes {stable_mosaic.version = 11 : i64} {
  func.func @_spec_ffn_kernel(%arg0: i32, %arg1: memref<8x32xf32, #tpu.memory_space<vmem>>, %arg2: memref<8x1xi32, #tpu.memory_space<vmem>>, %arg3: memref<32x128xf32, #tpu.memory_space<vmem>>, %arg4: memref<1x128xf32, #tpu.memory_space<vmem>>, %arg5: memref<1x128xf32, #tpu.memory_space<vmem>>, %arg6: memref<1x128xf32, #tpu.memory_space<vmem>>, %arg7: memref<128x128xf32, #tpu.memory_space<vmem>>, %arg8: memref<1x128xf32, #tpu.memory_space<vmem>>, %arg9: memref<1x128xf32, #tpu.memory_space<vmem>>, %arg10: memref<1x128xf32, #tpu.memory_space<vmem>>, %arg11: memref<128x128xf32, #tpu.memory_space<vmem>>, %arg12: memref<1x128xf32, #tpu.memory_space<vmem>>, %arg13: memref<1x128xf32, #tpu.memory_space<vmem>>, %arg14: memref<1x128xf32, #tpu.memory_space<vmem>>, %arg15: memref<128x128xf32, #tpu.memory_space<vmem>>, %arg16: memref<1x128xf32, #tpu.memory_space<vmem>>, %arg17: memref<1x128xf32, #tpu.memory_space<vmem>>, %arg18: memref<1x128xf32, #tpu.memory_space<vmem>>, %arg19: memref<128x128xf32, #tpu.memory_space<vmem>>, %arg20: memref<1x128xf32, #tpu.memory_space<vmem>>, %arg21: memref<128x384xf32, #tpu.memory_space<vmem>>, %arg22: memref<1x384xf32, #tpu.memory_space<vmem>>, %arg23: memref<8x128xf32, #tpu.memory_space<vmem>>) attributes {dimension_semantics = [#tpu.dimension_semantics<parallel>], iteration_bounds = array<i64: 2>, scalar_prefetch = 0 : i64, scratch_operands = 0 : i64, tpu.core_type = #tpu.core_type<tc>, window_params = [{transform_indices = @transform_0, window_bounds = array<i64: 8, 32>}, {transform_indices = @transform_1, window_bounds = array<i64: 8, 1>}, {pipeline_mode = #tpu.pipeline_mode<synchronous>, transform_indices = @transform_2, window_bounds = array<i64: 32, 128>}, {pipeline_mode = #tpu.pipeline_mode<synchronous>, transform_indices = @transform_3, window_bounds = array<i64: 1, 128>}, {pipeline_mode = #tpu.pipeline_mode<synchronous>, transform_indices = @transform_4, window_bounds = array<i64: 1, 128>}, {pipeline_mode = #tpu.pipeline_mode<synchronous>, transform_indices = @transform_5, window_bounds = array<i64: 1, 128>}, {pipeline_mode = #tpu.pipeline_mode<synchronous>, transform_indices = @transform_6, window_bounds = array<i64: 128, 128>}, {pipeline_mode = #tpu.pipeline_mode<synchronous>, transform_indices = @transform_7, window_bounds = array<i64: 1, 128>}, {pipeline_mode = #tpu.pipeline_mode<synchronous>, transform_indices = @transform_8, window_bounds = array<i64: 1, 128>}, {pipeline_mode = #tpu.pipeline_mode<synchronous>, transform_indices = @transform_9, window_bounds = array<i64: 1, 128>}, {pipeline_mode = #tpu.pipeline_mode<synchronous>, transform_indices = @transform_10, window_bounds = array<i64: 128, 128>}, {pipeline_mode = #tpu.pipeline_mode<synchronous>, transform_indices = @transform_11, window_bounds = array<i64: 1, 128>}, {pipeline_mode = #tpu.pipeline_mode<synchronous>, transform_indices = @transform_12, window_bounds = array<i64: 1, 128>}, {pipeline_mode = #tpu.pipeline_mode<synchronous>, transform_indices = @transform_13, window_bounds = array<i64: 1, 128>}, {pipeline_mode = #tpu.pipeline_mode<synchronous>, transform_indices = @transform_14, window_bounds = array<i64: 128, 128>}, {pipeline_mode = #tpu.pipeline_mode<synchronous>, transform_indices = @transform_15, window_bounds = array<i64: 1, 128>}, {pipeline_mode = #tpu.pipeline_mode<synchronous>, transform_indices = @transform_16, window_bounds = array<i64: 1, 128>}, {pipeline_mode = #tpu.pipeline_mode<synchronous>, transform_indices = @transform_17, window_bounds = array<i64: 1, 128>}, {pipeline_mode = #tpu.pipeline_mode<synchronous>, transform_indices = @transform_18, window_bounds = array<i64: 128, 128>}, {pipeline_mode = #tpu.pipeline_mode<synchronous>, transform_indices = @transform_19, window_bounds = array<i64: 1, 128>}, {pipeline_mode = #tpu.pipeline_mode<synchronous>, transform_indices = @transform_20, window_bounds = array<i64: 128, 384>}, {pipeline_mode = #tpu.pipeline_mode<synchronous>, transform_indices = @transform_21, window_bounds = array<i64: 1, 384>}, {transform_indices = @transform_22, window_bounds = array<i64: 8, 128>}]} {
    %c0 = arith.constant 0 : index
    %c0_0 = arith.constant 0 : index
    %0 = vector.load %arg1[%c0, %c0_0] : memref<8x32xf32, #tpu.memory_space<vmem>>, vector<8x32xf32>
    %c0_1 = arith.constant 0 : index
    %c0_2 = arith.constant 0 : index
    %1 = vector.load %arg3[%c0_1, %c0_2] : memref<32x128xf32, #tpu.memory_space<vmem>>, vector<32x128xf32>
    %cst = arith.constant dense<0.000000e+00> : vector<8x128xf32>
    %2 = tpu.matmul %0, %1, %cst {dimension_numbers = #tpu.dot_dimension_numbers<[1], [0], [0], [1], [0, 0, 1, 1], [], []>} : vector<8x32xf32>, vector<32x128xf32>, vector<8x128xf32> -> vector<8x128xf32>
    %c0_3 = arith.constant 0 : index
    %c0_4 = arith.constant 0 : index
    %3 = vector.load %arg4[%c0_3, %c0_4] : memref<1x128xf32, #tpu.memory_space<vmem>>, vector<1x128xf32>
    %4 = vector.broadcast %3 : vector<1x128xf32> to vector<8x128xf32>
    %5 = arith.addf %2, %4 : vector<8x128xf32>
    %c0_5 = arith.constant 0 : index
    %c0_6 = arith.constant 0 : index
    %6 = vector.load %arg5[%c0_5, %c0_6] : memref<1x128xf32, #tpu.memory_space<vmem>>, vector<1x128xf32>
    %7 = vector.broadcast %6 : vector<1x128xf32> to vector<8x128xf32>
    %8 = arith.mulf %5, %7 : vector<8x128xf32>
    %c0_7 = arith.constant 0 : index
    %c0_8 = arith.constant 0 : index
    %9 = vector.load %arg6[%c0_7, %c0_8] : memref<1x128xf32, #tpu.memory_space<vmem>>, vector<1x128xf32>
    %10 = vector.broadcast %9 : vector<1x128xf32> to vector<8x128xf32>
    %11 = arith.addf %8, %10 : vector<8x128xf32>
    %cst_9 = arith.constant 0.000000e+00 : f32
    %12 = vector.broadcast %cst_9 : f32 to vector<8x128xf32>
    %13 = arith.cmpf oge, %11, %12 : vector<8x128xf32>
    %cst_10 = arith.constant 0.00999999977 : f32
    %14 = vector.broadcast %cst_10 : f32 to vector<8x128xf32>
    %15 = arith.mulf %14, %11 : vector<8x128xf32>
    %16 = arith.select %13, %11, %15 : vector<8x128xi1>, vector<8x128xf32>
    %c0_11 = arith.constant 0 : index
    %c0_12 = arith.constant 0 : index
    %17 = vector.load %arg7[%c0_11, %c0_12] : memref<128x128xf32, #tpu.memory_space<vmem>>, vector<128x128xf32>
    %cst_13 = arith.constant dense<0.000000e+00> : vector<8x128xf32>
    %18 = tpu.matmul %16, %17, %cst_13 {dimension_numbers = #tpu.dot_dimension_numbers<[1], [0], [0], [1], [0, 0, 1, 1], [], []>} : vector<8x128xf32>, vector<128x128xf32>, vector<8x128xf32> -> vector<8x128xf32>
    %c0_14 = arith.constant 0 : index
    %c0_15 = arith.constant 0 : index
    %19 = vector.load %arg8[%c0_14, %c0_15] : memref<1x128xf32, #tpu.memory_space<vmem>>, vector<1x128xf32>
    %20 = vector.broadcast %19 : vector<1x128xf32> to vector<8x128xf32>
    %21 = arith.addf %18, %20 : vector<8x128xf32>
    %c0_16 = arith.constant 0 : index
    %c0_17 = arith.constant 0 : index
    %22 = vector.load %arg9[%c0_16, %c0_17] : memref<1x128xf32, #tpu.memory_space<vmem>>, vector<1x128xf32>
    %23 = vector.broadcast %22 : vector<1x128xf32> to vector<8x128xf32>
    %24 = arith.mulf %21, %23 : vector<8x128xf32>
    %c0_18 = arith.constant 0 : index
    %c0_19 = arith.constant 0 : index
    %25 = vector.load %arg10[%c0_18, %c0_19] : memref<1x128xf32, #tpu.memory_space<vmem>>, vector<1x128xf32>
    %26 = vector.broadcast %25 : vector<1x128xf32> to vector<8x128xf32>
    %27 = arith.addf %24, %26 : vector<8x128xf32>
    %cst_20 = arith.constant 0.000000e+00 : f32
    %28 = vector.broadcast %cst_20 : f32 to vector<8x128xf32>
    %29 = arith.cmpf oge, %27, %28 : vector<8x128xf32>
    %cst_21 = arith.constant 0.00999999977 : f32
    %30 = vector.broadcast %cst_21 : f32 to vector<8x128xf32>
    %31 = arith.mulf %30, %27 : vector<8x128xf32>
    %32 = arith.select %29, %27, %31 : vector<8x128xi1>, vector<8x128xf32>
    %c0_22 = arith.constant 0 : index
    %c0_23 = arith.constant 0 : index
    %33 = vector.load %arg11[%c0_22, %c0_23] : memref<128x128xf32, #tpu.memory_space<vmem>>, vector<128x128xf32>
    %cst_24 = arith.constant dense<0.000000e+00> : vector<8x128xf32>
    %34 = tpu.matmul %32, %33, %cst_24 {dimension_numbers = #tpu.dot_dimension_numbers<[1], [0], [0], [1], [0, 0, 1, 1], [], []>} : vector<8x128xf32>, vector<128x128xf32>, vector<8x128xf32> -> vector<8x128xf32>
    %c0_25 = arith.constant 0 : index
    %c0_26 = arith.constant 0 : index
    %35 = vector.load %arg12[%c0_25, %c0_26] : memref<1x128xf32, #tpu.memory_space<vmem>>, vector<1x128xf32>
    %36 = vector.broadcast %35 : vector<1x128xf32> to vector<8x128xf32>
    %37 = arith.addf %34, %36 : vector<8x128xf32>
    %38 = arith.addf %5, %37 : vector<8x128xf32>
    %c0_27 = arith.constant 0 : index
    %c0_28 = arith.constant 0 : index
    %39 = vector.load %arg13[%c0_27, %c0_28] : memref<1x128xf32, #tpu.memory_space<vmem>>, vector<1x128xf32>
    %40 = vector.broadcast %39 : vector<1x128xf32> to vector<8x128xf32>
    %41 = arith.mulf %38, %40 : vector<8x128xf32>
    %c0_29 = arith.constant 0 : index
    %c0_30 = arith.constant 0 : index
    %42 = vector.load %arg14[%c0_29, %c0_30] : memref<1x128xf32, #tpu.memory_space<vmem>>, vector<1x128xf32>
    %43 = vector.broadcast %42 : vector<1x128xf32> to vector<8x128xf32>
    %44 = arith.addf %41, %43 : vector<8x128xf32>
    %cst_31 = arith.constant 0.000000e+00 : f32
    %45 = vector.broadcast %cst_31 : f32 to vector<8x128xf32>
    %46 = arith.cmpf oge, %44, %45 : vector<8x128xf32>
    %cst_32 = arith.constant 0.00999999977 : f32
    %47 = vector.broadcast %cst_32 : f32 to vector<8x128xf32>
    %48 = arith.mulf %47, %44 : vector<8x128xf32>
    %49 = arith.select %46, %44, %48 : vector<8x128xi1>, vector<8x128xf32>
    %c0_33 = arith.constant 0 : index
    %c0_34 = arith.constant 0 : index
    %50 = vector.load %arg15[%c0_33, %c0_34] : memref<128x128xf32, #tpu.memory_space<vmem>>, vector<128x128xf32>
    %cst_35 = arith.constant dense<0.000000e+00> : vector<8x128xf32>
    %51 = tpu.matmul %49, %50, %cst_35 {dimension_numbers = #tpu.dot_dimension_numbers<[1], [0], [0], [1], [0, 0, 1, 1], [], []>} : vector<8x128xf32>, vector<128x128xf32>, vector<8x128xf32> -> vector<8x128xf32>
    %c0_36 = arith.constant 0 : index
    %c0_37 = arith.constant 0 : index
    %52 = vector.load %arg16[%c0_36, %c0_37] : memref<1x128xf32, #tpu.memory_space<vmem>>, vector<1x128xf32>
    %53 = vector.broadcast %52 : vector<1x128xf32> to vector<8x128xf32>
    %54 = arith.addf %51, %53 : vector<8x128xf32>
    %c0_38 = arith.constant 0 : index
    %c0_39 = arith.constant 0 : index
    %55 = vector.load %arg17[%c0_38, %c0_39] : memref<1x128xf32, #tpu.memory_space<vmem>>, vector<1x128xf32>
    %56 = vector.broadcast %55 : vector<1x128xf32> to vector<8x128xf32>
    %57 = arith.mulf %54, %56 : vector<8x128xf32>
    %c0_40 = arith.constant 0 : index
    %c0_41 = arith.constant 0 : index
    %58 = vector.load %arg18[%c0_40, %c0_41] : memref<1x128xf32, #tpu.memory_space<vmem>>, vector<1x128xf32>
    %59 = vector.broadcast %58 : vector<1x128xf32> to vector<8x128xf32>
    %60 = arith.addf %57, %59 : vector<8x128xf32>
    %cst_42 = arith.constant 0.000000e+00 : f32
    %61 = vector.broadcast %cst_42 : f32 to vector<8x128xf32>
    %62 = arith.cmpf oge, %60, %61 : vector<8x128xf32>
    %cst_43 = arith.constant 0.00999999977 : f32
    %63 = vector.broadcast %cst_43 : f32 to vector<8x128xf32>
    %64 = arith.mulf %63, %60 : vector<8x128xf32>
    %65 = arith.select %62, %60, %64 : vector<8x128xi1>, vector<8x128xf32>
    %c0_44 = arith.constant 0 : index
    %c0_45 = arith.constant 0 : index
    %66 = vector.load %arg19[%c0_44, %c0_45] : memref<128x128xf32, #tpu.memory_space<vmem>>, vector<128x128xf32>
    %cst_46 = arith.constant dense<0.000000e+00> : vector<8x128xf32>
    %67 = tpu.matmul %65, %66, %cst_46 {dimension_numbers = #tpu.dot_dimension_numbers<[1], [0], [0], [1], [0, 0, 1, 1], [], []>} : vector<8x128xf32>, vector<128x128xf32>, vector<8x128xf32> -> vector<8x128xf32>
    %c0_47 = arith.constant 0 : index
    %c0_48 = arith.constant 0 : index
    %68 = vector.load %arg20[%c0_47, %c0_48] : memref<1x128xf32, #tpu.memory_space<vmem>>, vector<1x128xf32>
    %69 = vector.broadcast %68 : vector<1x128xf32> to vector<8x128xf32>
    %70 = arith.addf %67, %69 : vector<8x128xf32>
    %71 = arith.addf %38, %70 : vector<8x128xf32>
    %c0_49 = arith.constant 0 : index
    %c0_50 = arith.constant 0 : index
    %72 = vector.load %arg21[%c0_49, %c0_50] : memref<128x384xf32, #tpu.memory_space<vmem>>, vector<128x384xf32>
    %cst_51 = arith.constant dense<0.000000e+00> : vector<8x384xf32>
    %73 = tpu.matmul %71, %72, %cst_51 {dimension_numbers = #tpu.dot_dimension_numbers<[1], [0], [0], [1], [0, 0, 1, 1], [], []>} : vector<8x128xf32>, vector<128x384xf32>, vector<8x384xf32> -> vector<8x384xf32>
    %c0_52 = arith.constant 0 : index
    %c0_53 = arith.constant 0 : index
    %74 = vector.load %arg22[%c0_52, %c0_53] : memref<1x384xf32, #tpu.memory_space<vmem>>, vector<1x384xf32>
    %75 = vector.broadcast %74 : vector<1x384xf32> to vector<8x384xf32>
    %76 = arith.addf %73, %75 : vector<8x384xf32>
    %77 = vector.extract_strided_slice %76 {offsets = [0, 0], sizes = [8, 128], strides = [1, 1]} : vector<8x384xf32> to vector<8x128xf32>
    %78 = vector.extract_strided_slice %76 {offsets = [0, 128], sizes = [8, 128], strides = [1, 1]} : vector<8x384xf32> to vector<8x128xf32>
    %79 = vector.extract_strided_slice %76 {offsets = [0, 256], sizes = [8, 128], strides = [1, 1]} : vector<8x384xf32> to vector<8x128xf32>
    %80 = arith.negf %79 : vector<8x128xf32>
    %81 = math.exp %80 : vector<8x128xf32>
    %cst_54 = arith.constant 1.000000e+00 : f32
    %82 = vector.broadcast %cst_54 : f32 to vector<8x128xf32>
    %83 = arith.addf %82, %81 : vector<8x128xf32>
    %84 = arith.divf %82, %83 : vector<8x128xf32>
    %c0_55 = arith.constant 0 : index
    %c0_56 = arith.constant 0 : index
    %85 = vector.load %arg2[%c0_55, %c0_56] : memref<8x1xi32, #tpu.memory_space<vmem>>, vector<8x1xi32>
    %c2_i32 = arith.constant 2 : i32
    %86 = vector.broadcast %c2_i32 : i32 to vector<8x1xi32>
    %87 = arith.addi %85, %86 : vector<8x1xi32>
    %c1_i32 = arith.constant 1 : i32
    %88 = vector.broadcast %c1_i32 : i32 to vector<8x1xi32>
    %89 = arith.addi %87, %88 : vector<8x1xi32>
    %c128_i32 = arith.constant 128 : i32
    %90 = vector.broadcast %c128_i32 : i32 to vector<8x1xi32>
    %91 = arith.minsi %89, %90 : vector<8x1xi32>
    %c0_i32 = arith.constant 0 : i32
    %92 = vector.broadcast %c0_i32 : i32 to vector<8x1xi32>
    %93 = arith.addi %92, %91 : vector<8x1xi32>
    %c128_i32_57 = arith.constant 128 : i32
    %94 = vector.broadcast %c128_i32_57 : i32 to vector<8x1xi32>
    %95 = arith.cmpi eq, %93, %94 : vector<8x1xi32>
    %c0_i32_58 = arith.constant 0 : i32
    %96 = vector.broadcast %c0_i32_58 : i32 to vector<8x1xi32>
    %97 = arith.select %95, %96, %93 : vector<8x1xi1>, vector<8x1xi32>
    %c0_i32_59 = arith.constant 0 : i32
    %98 = vector.broadcast %c0_i32_59 : i32 to vector<8x1xi32>
    %99 = arith.shrsi %97, %98 : vector<8x1xi32>
    %c1_i32_60 = arith.constant 1 : i32
    %100 = vector.broadcast %c1_i32_60 : i32 to vector<8x1xi32>
    %101 = arith.andi %99, %100 : vector<8x1xi32>
    %c1_i32_61 = arith.constant 1 : i32
    %102 = vector.broadcast %c1_i32_61 : i32 to vector<8x1xi32>
    %103 = arith.cmpi eq, %101, %102 : vector<8x1xi32>
    %c1_i32_62 = arith.constant 1 : i32
    %104 = tpu.dynamic_rotate %78 by %c1_i32_62 dim 1 : vector<8x128xf32>, i32 -> vector<8x128xf32>
    %105 = vector.shape_cast %103 : vector<8x1xi1> to vector<8x1xi1>
    %106 = vector.broadcast %105 : vector<8x1xi1> to vector<8x128xi1>
    %107 = arith.select %106, %104, %78 : vector<8x128xi1>, vector<8x128xf32>
    %c1_i32_63 = arith.constant 1 : i32
    %108 = vector.broadcast %c1_i32_63 : i32 to vector<8x1xi32>
    %109 = arith.shrsi %97, %108 : vector<8x1xi32>
    %c1_i32_64 = arith.constant 1 : i32
    %110 = vector.broadcast %c1_i32_64 : i32 to vector<8x1xi32>
    %111 = arith.andi %109, %110 : vector<8x1xi32>
    %c1_i32_65 = arith.constant 1 : i32
    %112 = vector.broadcast %c1_i32_65 : i32 to vector<8x1xi32>
    %113 = arith.cmpi eq, %111, %112 : vector<8x1xi32>
    %c2_i32_66 = arith.constant 2 : i32
    %114 = tpu.dynamic_rotate %107 by %c2_i32_66 dim 1 : vector<8x128xf32>, i32 -> vector<8x128xf32>
    %115 = vector.shape_cast %113 : vector<8x1xi1> to vector<8x1xi1>
    %116 = vector.broadcast %115 : vector<8x1xi1> to vector<8x128xi1>
    %117 = arith.select %116, %114, %107 : vector<8x128xi1>, vector<8x128xf32>
    %c2_i32_67 = arith.constant 2 : i32
    %118 = vector.broadcast %c2_i32_67 : i32 to vector<8x1xi32>
    %119 = arith.shrsi %97, %118 : vector<8x1xi32>
    %c1_i32_68 = arith.constant 1 : i32
    %120 = vector.broadcast %c1_i32_68 : i32 to vector<8x1xi32>
    %121 = arith.andi %119, %120 : vector<8x1xi32>
    %c1_i32_69 = arith.constant 1 : i32
    %122 = vector.broadcast %c1_i32_69 : i32 to vector<8x1xi32>
    %123 = arith.cmpi eq, %121, %122 : vector<8x1xi32>
    %c4_i32 = arith.constant 4 : i32
    %124 = tpu.dynamic_rotate %117 by %c4_i32 dim 1 : vector<8x128xf32>, i32 -> vector<8x128xf32>
    %125 = vector.shape_cast %123 : vector<8x1xi1> to vector<8x1xi1>
    %126 = vector.broadcast %125 : vector<8x1xi1> to vector<8x128xi1>
    %127 = arith.select %126, %124, %117 : vector<8x128xi1>, vector<8x128xf32>
    %c3_i32 = arith.constant 3 : i32
    %128 = vector.broadcast %c3_i32 : i32 to vector<8x1xi32>
    %129 = arith.shrsi %97, %128 : vector<8x1xi32>
    %c1_i32_70 = arith.constant 1 : i32
    %130 = vector.broadcast %c1_i32_70 : i32 to vector<8x1xi32>
    %131 = arith.andi %129, %130 : vector<8x1xi32>
    %c1_i32_71 = arith.constant 1 : i32
    %132 = vector.broadcast %c1_i32_71 : i32 to vector<8x1xi32>
    %133 = arith.cmpi eq, %131, %132 : vector<8x1xi32>
    %c8_i32 = arith.constant 8 : i32
    %134 = tpu.dynamic_rotate %127 by %c8_i32 dim 1 : vector<8x128xf32>, i32 -> vector<8x128xf32>
    %135 = vector.shape_cast %133 : vector<8x1xi1> to vector<8x1xi1>
    %136 = vector.broadcast %135 : vector<8x1xi1> to vector<8x128xi1>
    %137 = arith.select %136, %134, %127 : vector<8x128xi1>, vector<8x128xf32>
    %c4_i32_72 = arith.constant 4 : i32
    %138 = vector.broadcast %c4_i32_72 : i32 to vector<8x1xi32>
    %139 = arith.shrsi %97, %138 : vector<8x1xi32>
    %c1_i32_73 = arith.constant 1 : i32
    %140 = vector.broadcast %c1_i32_73 : i32 to vector<8x1xi32>
    %141 = arith.andi %139, %140 : vector<8x1xi32>
    %c1_i32_74 = arith.constant 1 : i32
    %142 = vector.broadcast %c1_i32_74 : i32 to vector<8x1xi32>
    %143 = arith.cmpi eq, %141, %142 : vector<8x1xi32>
    %c16_i32 = arith.constant 16 : i32
    %144 = tpu.dynamic_rotate %137 by %c16_i32 dim 1 : vector<8x128xf32>, i32 -> vector<8x128xf32>
    %145 = vector.shape_cast %143 : vector<8x1xi1> to vector<8x1xi1>
    %146 = vector.broadcast %145 : vector<8x1xi1> to vector<8x128xi1>
    %147 = arith.select %146, %144, %137 : vector<8x128xi1>, vector<8x128xf32>
    %c5_i32 = arith.constant 5 : i32
    %148 = vector.broadcast %c5_i32 : i32 to vector<8x1xi32>
    %149 = arith.shrsi %97, %148 : vector<8x1xi32>
    %c1_i32_75 = arith.constant 1 : i32
    %150 = vector.broadcast %c1_i32_75 : i32 to vector<8x1xi32>
    %151 = arith.andi %149, %150 : vector<8x1xi32>
    %c1_i32_76 = arith.constant 1 : i32
    %152 = vector.broadcast %c1_i32_76 : i32 to vector<8x1xi32>
    %153 = arith.cmpi eq, %151, %152 : vector<8x1xi32>
    %c32_i32 = arith.constant 32 : i32
    %154 = tpu.dynamic_rotate %147 by %c32_i32 dim 1 : vector<8x128xf32>, i32 -> vector<8x128xf32>
    %155 = vector.shape_cast %153 : vector<8x1xi1> to vector<8x1xi1>
    %156 = vector.broadcast %155 : vector<8x1xi1> to vector<8x128xi1>
    %157 = arith.select %156, %154, %147 : vector<8x128xi1>, vector<8x128xf32>
    %c6_i32 = arith.constant 6 : i32
    %158 = vector.broadcast %c6_i32 : i32 to vector<8x1xi32>
    %159 = arith.shrsi %97, %158 : vector<8x1xi32>
    %c1_i32_77 = arith.constant 1 : i32
    %160 = vector.broadcast %c1_i32_77 : i32 to vector<8x1xi32>
    %161 = arith.andi %159, %160 : vector<8x1xi32>
    %c1_i32_78 = arith.constant 1 : i32
    %162 = vector.broadcast %c1_i32_78 : i32 to vector<8x1xi32>
    %163 = arith.cmpi eq, %161, %162 : vector<8x1xi32>
    %c64_i32 = arith.constant 64 : i32
    %164 = tpu.dynamic_rotate %157 by %c64_i32 dim 1 : vector<8x128xf32>, i32 -> vector<8x128xf32>
    %165 = vector.shape_cast %163 : vector<8x1xi1> to vector<8x1xi1>
    %166 = vector.broadcast %165 : vector<8x1xi1> to vector<8x128xi1>
    %167 = arith.select %166, %164, %157 : vector<8x128xi1>, vector<8x128xf32>
    %168 = arith.mulf %77, %84 : vector<8x128xf32>
    %cst_79 = arith.constant 1.000000e+00 : f32
    %169 = vector.broadcast %cst_79 : f32 to vector<8x128xf32>
    %170 = arith.subf %169, %84 : vector<8x128xf32>
    %171 = arith.mulf %167, %170 : vector<8x128xf32>
    %172 = arith.addf %168, %171 : vector<8x128xf32>
    %173 = tpu.iota {dimensions = array<i32: 1>} : vector<8x128xi32>
    %c2_i32_80 = arith.constant 2 : i32
    %174 = vector.broadcast %c2_i32_80 : i32 to vector<8x1xi32>
    %175 = arith.addi %85, %174 : vector<8x1xi32>
    %c127_i32 = arith.constant 127 : i32
    %176 = vector.broadcast %c127_i32 : i32 to vector<8x1xi32>
    %177 = arith.minsi %175, %176 : vector<8x1xi32>
    %178 = vector.broadcast %177 : vector<8x1xi32> to vector<8x128xi32>
    %179 = arith.cmpi sle, %173, %178 : vector<8x128xi32>
    %cst_81 = arith.constant 0.000000e+00 : f32
    %180 = vector.broadcast %cst_81 : f32 to vector<8x128xf32>
    %181 = arith.select %179, %172, %180 : vector<8x128xi1>, vector<8x128xf32>
    %cst_82 = arith.constant 0.000000e+00 : f32
    %182 = vector.broadcast %cst_82 : f32 to vector<8x128xf32>
    %183 = arith.maximumf %181, %182 : vector<8x128xf32>
    %cst_83 = arith.constant dense<0.000000e+00> : vector<8xf32>
    %184 = vector.multi_reduction <add>, %183, %cst_83 [1] : vector<8x128xf32> to vector<8xf32>
    %185 = vector.shape_cast %184 : vector<8xf32> to vector<8x1xf32>
    %cst_84 = arith.constant 9.99999996E-13 : f32
    %186 = vector.broadcast %cst_84 : f32 to vector<8x1xf32>
    %187 = arith.maximumf %185, %186 : vector<8x1xf32>
    %188 = vector.broadcast %187 : vector<8x1xf32> to vector<8x128xf32>
    %189 = arith.divf %183, %188 : vector<8x128xf32>
    %cst_85 = arith.constant dense<0xFF800000> : vector<8xf32>
    %190 = vector.multi_reduction <maximumf>, %189, %cst_85 [1] : vector<8x128xf32> to vector<8xf32>
    %191 = vector.shape_cast %190 : vector<8xf32> to vector<8x1xf32>
    %cst_86 = arith.constant 0.000000e+00 : f32
    %192 = vector.broadcast %cst_86 : f32 to vector<8x1xf32>
    %193 = arith.cmpf ole, %191, %192 : vector<8x1xf32>
    %c0_i32_87 = arith.constant 0 : i32
    %194 = vector.broadcast %c0_i32_87 : i32 to vector<8x128xi32>
    %195 = arith.cmpi eq, %173, %194 : vector<8x128xi32>
    %196 = vector.broadcast %193 : vector<8x1xi1> to vector<8x128xi1>
    %197 = arith.andi %196, %195 : vector<8x128xi1>
    %cst_88 = arith.constant 1.000000e+00 : f32
    %cst_89 = arith.constant 0.000000e+00 : f32
    %198 = vector.broadcast %cst_88 : f32 to vector<8x128xf32>
    %199 = vector.broadcast %cst_89 : f32 to vector<8x128xf32>
    %200 = arith.select %197, %198, %199 : vector<8x128xi1>, vector<8x128xf32>
    %201 = arith.addf %189, %200 : vector<8x128xf32>
    %c0_90 = arith.constant 0 : index
    %c0_91 = arith.constant 0 : index
    %202 = vector.load %arg23[%c0_90, %c0_91] : memref<8x128xf32, #tpu.memory_space<vmem>>, vector<8x128xf32>
    tpu.vector_store %arg23[%c0_90, %c0_91], %201 {strides = array<i32>} : memref<8x128xf32, #tpu.memory_space<vmem>>, vector<8x128xf32>,
    return
  }
  func.func @transform_0(%arg0: i32) -> (i32, i32) {
    %c0_i32 = arith.constant 0 : i32
    %c0_i32_0 = arith.constant 0 : i32
    return %arg0, %c0_i32 : i32, i32
  }
  func.func @transform_1(%arg0: i32) -> (i32, i32) {
    %c0_i32 = arith.constant 0 : i32
    %c0_i32_0 = arith.constant 0 : i32
    return %arg0, %c0_i32 : i32, i32
  }
  func.func @transform_2(%arg0: i32) -> (i32, i32) {
    %c0_i32 = arith.constant 0 : i32
    %c0_i32_0 = arith.constant 0 : i32
    %c0_i32_1 = arith.constant 0 : i32
    return %c0_i32, %c0_i32_0 : i32, i32
  }
  func.func @transform_3(%arg0: i32) -> (i32, i32) {
    %c0_i32 = arith.constant 0 : i32
    %c0_i32_0 = arith.constant 0 : i32
    %c0_i32_1 = arith.constant 0 : i32
    return %c0_i32, %c0_i32_0 : i32, i32
  }
  func.func @transform_4(%arg0: i32) -> (i32, i32) {
    %c0_i32 = arith.constant 0 : i32
    %c0_i32_0 = arith.constant 0 : i32
    %c0_i32_1 = arith.constant 0 : i32
    return %c0_i32, %c0_i32_0 : i32, i32
  }
  func.func @transform_5(%arg0: i32) -> (i32, i32) {
    %c0_i32 = arith.constant 0 : i32
    %c0_i32_0 = arith.constant 0 : i32
    %c0_i32_1 = arith.constant 0 : i32
    return %c0_i32, %c0_i32_0 : i32, i32
  }
  func.func @transform_6(%arg0: i32) -> (i32, i32) {
    %c0_i32 = arith.constant 0 : i32
    %c0_i32_0 = arith.constant 0 : i32
    %c0_i32_1 = arith.constant 0 : i32
    return %c0_i32, %c0_i32_0 : i32, i32
  }
  func.func @transform_7(%arg0: i32) -> (i32, i32) {
    %c0_i32 = arith.constant 0 : i32
    %c0_i32_0 = arith.constant 0 : i32
    %c0_i32_1 = arith.constant 0 : i32
    return %c0_i32, %c0_i32_0 : i32, i32
  }
  func.func @transform_8(%arg0: i32) -> (i32, i32) {
    %c0_i32 = arith.constant 0 : i32
    %c0_i32_0 = arith.constant 0 : i32
    %c0_i32_1 = arith.constant 0 : i32
    return %c0_i32, %c0_i32_0 : i32, i32
  }
  func.func @transform_9(%arg0: i32) -> (i32, i32) {
    %c0_i32 = arith.constant 0 : i32
    %c0_i32_0 = arith.constant 0 : i32
    %c0_i32_1 = arith.constant 0 : i32
    return %c0_i32, %c0_i32_0 : i32, i32
  }
  func.func @transform_10(%arg0: i32) -> (i32, i32) {
    %c0_i32 = arith.constant 0 : i32
    %c0_i32_0 = arith.constant 0 : i32
    %c0_i32_1 = arith.constant 0 : i32
    return %c0_i32, %c0_i32_0 : i32, i32
  }
  func.func @transform_11(%arg0: i32) -> (i32, i32) {
    %c0_i32 = arith.constant 0 : i32
    %c0_i32_0 = arith.constant 0 : i32
    %c0_i32_1 = arith.constant 0 : i32
    return %c0_i32, %c0_i32_0 : i32, i32
  }
  func.func @transform_12(%arg0: i32) -> (i32, i32) {
    %c0_i32 = arith.constant 0 : i32
    %c0_i32_0 = arith.constant 0 : i32
    %c0_i32_1 = arith.constant 0 : i32
    return %c0_i32, %c0_i32_0 : i32, i32
  }
  func.func @transform_13(%arg0: i32) -> (i32, i32) {
    %c0_i32 = arith.constant 0 : i32
    %c0_i32_0 = arith.constant 0 : i32
    %c0_i32_1 = arith.constant 0 : i32
    return %c0_i32, %c0_i32_0 : i32, i32
  }
  func.func @transform_14(%arg0: i32) -> (i32, i32) {
    %c0_i32 = arith.constant 0 : i32
    %c0_i32_0 = arith.constant 0 : i32
    %c0_i32_1 = arith.constant 0 : i32
    return %c0_i32, %c0_i32_0 : i32, i32
  }
  func.func @transform_15(%arg0: i32) -> (i32, i32) {
    %c0_i32 = arith.constant 0 : i32
    %c0_i32_0 = arith.constant 0 : i32
    %c0_i32_1 = arith.constant 0 : i32
    return %c0_i32, %c0_i32_0 : i32, i32
  }
  func.func @transform_16(%arg0: i32) -> (i32, i32) {
    %c0_i32 = arith.constant 0 : i32
    %c0_i32_0 = arith.constant 0 : i32
    %c0_i32_1 = arith.constant 0 : i32
    return %c0_i32, %c0_i32_0 : i32, i32
  }
  func.func @transform_17(%arg0: i32) -> (i32, i32) {
    %c0_i32 = arith.constant 0 : i32
    %c0_i32_0 = arith.constant 0 : i32
    %c0_i32_1 = arith.constant 0 : i32
    return %c0_i32, %c0_i32_0 : i32, i32
  }
  func.func @transform_18(%arg0: i32) -> (i32, i32) {
    %c0_i32 = arith.constant 0 : i32
    %c0_i32_0 = arith.constant 0 : i32
    %c0_i32_1 = arith.constant 0 : i32
    return %c0_i32, %c0_i32_0 : i32, i32
  }
  func.func @transform_19(%arg0: i32) -> (i32, i32) {
    %c0_i32 = arith.constant 0 : i32
    %c0_i32_0 = arith.constant 0 : i32
    %c0_i32_1 = arith.constant 0 : i32
    return %c0_i32, %c0_i32_0 : i32, i32
  }
  func.func @transform_20(%arg0: i32) -> (i32, i32) {
    %c0_i32 = arith.constant 0 : i32
    %c0_i32_0 = arith.constant 0 : i32
    %c0_i32_1 = arith.constant 0 : i32
    return %c0_i32, %c0_i32_0 : i32, i32
  }
  func.func @transform_21(%arg0: i32) -> (i32, i32) {
    %c0_i32 = arith.constant 0 : i32
    %c0_i32_0 = arith.constant 0 : i32
    %c0_i32_1 = arith.constant 0 : i32
    return %c0_i32, %c0_i32_0 : i32, i32
  }
  func.func @transform_22(%arg0: i32) -> (i32, i32) {
    %c0_i32 = arith.constant 0 : i32
    %c0_i32_0 = arith.constant 0 : i32
    return %arg0, %c0_i32 : i32, i32
  }
}

</mosaic_0001>

<llo_original>
// kernel: tpu_custom_call.1
$region0: #{tpu_custom_call.1}
  #allocation0 [shape = 'u32[]', space=smem, size = 0x4, offset = 0x4, fixed_abs, tag = 'smem constant byte address 0x4 - core index']
  #allocation1 [shape = 'u32[144,128]{1,0:T(1,128)}', space=vmem, size = 0x12000, scoped, tag = 'internal scratch']
  %s0 = inlined_call_operand.vmem [shape: f32[16,32], index: 0, kind: input, shape index: {}]
  %s1 = inlined_call_operand.vmem [shape: s32[16,1], index: 1, kind: input, shape index: {}]
  %s2 = inlined_call_operand.hbm [shape: f32[32,128], index: 2, kind: input, shape index: {}]
  %s3 = inlined_call_operand.vmem [shape: f32[1,128], index: 3, kind: input, shape index: {}]
  %s4 = inlined_call_operand.vmem [shape: f32[1,128], index: 4, kind: input, shape index: {}]
  %s5 = inlined_call_operand.vmem [shape: f32[1,128], index: 5, kind: input, shape index: {}]
  %s6 = inlined_call_operand.hbm [shape: f32[128,128], index: 6, kind: input, shape index: {}]
  %s7 = inlined_call_operand.vmem [shape: f32[1,128], index: 7, kind: input, shape index: {}]
  %s8 = inlined_call_operand.vmem [shape: f32[1,128], index: 8, kind: input, shape index: {}]
  %s9 = inlined_call_operand.vmem [shape: f32[1,128], index: 9, kind: input, shape index: {}]
  %s10 = inlined_call_operand.hbm [shape: f32[128,128], index: 10, kind: input, shape index: {}]
  %s11 = inlined_call_operand.vmem [shape: f32[1,128], index: 11, kind: input, shape index: {}]
  %s12 = inlined_call_operand.vmem [shape: f32[1,128], index: 12, kind: input, shape index: {}]
  %s13 = inlined_call_operand.vmem [shape: f32[1,128], index: 13, kind: input, shape index: {}]
  %s14 = inlined_call_operand.hbm [shape: f32[128,128], index: 14, kind: input, shape index: {}]
  %s15 = inlined_call_operand.vmem [shape: f32[1,128], index: 15, kind: input, shape index: {}]
  %s16 = inlined_call_operand.vmem [shape: f32[1,128], index: 16, kind: input, shape index: {}]
  %s17 = inlined_call_operand.vmem [shape: f32[1,128], index: 17, kind: input, shape index: {}]
  %s18 = inlined_call_operand.hbm [shape: f32[128,128], index: 18, kind: input, shape index: {}]
  %s19 = inlined_call_operand.vmem [shape: f32[1,128], index: 19, kind: input, shape index: {}]
  %s20 = inlined_call_operand.hbm [shape: f32[128,384], index: 20, kind: input, shape index: {}]
  %s21 = inlined_call_operand.vmem [shape: f32[1,384], index: 21, kind: input, shape index: {}]
  %s22 = inlined_call_operand.hbm [shape: f32[16,128], index: 22, kind: output, shape index: {}]
  %s23 = sld [smem:[#allocation0]]
  $region145: #{tpu_custom_call.1} parent=0
    _
  %s25 = ssub.s32 1, %s23
  %s26 = scalar_select 0, %s25, %s23
  $region1: #{tpu_custom_call.1} parent=0
    #allocation2 [shape = 'u8[16384]{0}', space=vmem, size = 0x4000, scoped, tag = 'input window, operand 2, single buffered']
    #allocation3 [shape = 's32[2]{0}', space=sflag, size = 0x8, scoped, tag = 'scoped memory for tpu_custom_call.1']
    #allocation4 [shape = 's32[2]{0}', space=sflag, size = 0x8, scoped, tag = 'scoped memory for tpu_custom_call.1']
    #allocation5 [shape = 'u8[65536]{0}', space=vmem, size = 0x10000, scoped, tag = 'input window, operand 6, single buffered']
    #allocation6 [shape = 's32[1]{0}', space=sflag, size = 0x4, scoped, tag = 'scoped memory for tpu_custom_call.1']
    #allocation7 [shape = 'u8[65536]{0}', space=vmem, size = 0x10000, scoped, tag = 'input window, operand 10, single buffered']
    #allocation8 [shape = 'u8[65536]{0}', space=vmem, size = 0x10000, scoped, tag = 'input window, operand 14, single buffered']
    #allocation9 [shape = 's32[1]{0}', space=sflag, size = 0x4, scoped, tag = 'scoped memory for tpu_custom_call.1']
    #allocation10 [shape = 'u8[65536]{0}', space=vmem, size = 0x10000, scoped, tag = 'input window, operand 18, single buffered']
    #allocation11 [shape = 'u8[196608]{0}', space=vmem, size = 0x30000, scoped, tag = 'input window, operand 20, single buffered']
    #allocation12 [shape = 's32[1]{0}', space=sflag, size = 0x4, scoped, tag = 'scoped memory for tpu_custom_call.1']
    #allocation13 [shape = 'u8[8192]{0}', space=vmem, size = 0x2000, scoped, tag = 'output window, operand 0']
    %27 = vsyncpa [#allocation3], 0
    %28 = vsyncpa [#allocation6], 0
    %29 = vsyncpa [#allocation9], 0
    %30 = vsyncpa [#allocation12], 0
    %31 = vsyncpa [#allocation4], 0
    %s32 = scalar_lea.sflag [#allocation4], 1
    %33 = vsyncpa %s32, 0
    loop: start=0, step=1, limit=4
    $region2: #{tpu_custom_call.1} parent=1 // loop_pre_header
      _
    $region3: #{tpu_custom_call.1} parent=1 // loop_header
      %s35 = sphi 0, %s39
      %p36 = scmp.ge.s32.totalorder %s35, 4
      %s45 = sphi 0, %s47
      %s48 = sphi 0, %s45
      %s49 = sphi 0, %s48
      %s65 = sphi 0, %s49
      %s71 = sphi 0, %s73
      %s74 = sphi 0, %s71
      %s75 = sphi 0, %s74
      %s91 = sphi 0, %s75
      %s95 = sphi 0, %s95
      %s97 = sphi 0, %s95
      %s98 = sphi 0, %s97
      %s112 = sphi 0, %s98
      %s116 = sphi 0, %s116
      %s118 = sphi 0, %s116
      %s119 = sphi 0, %s118
      %s133 = sphi 0, %s119
      %s137 = sphi 0, %s137
      %s139 = sphi 0, %s137
      %s140 = sphi 0, %s139
      %s154 = sphi 0, %s140
      %s158 = sphi 0, %s158
      %s160 = sphi 0, %s158
      %s161 = sphi 0, %s160
      %s175 = sphi 0, %s161
      %s179 = sphi 0, %s179
      %s181 = sphi 0, %s179
      %s182 = sphi 0, %s181
      %s196 = sphi 0, %s182
      %s200 = sphi 0, %s200
      %s202 = sphi 0, %s200
      %s203 = sphi 0, %s202
      %s217 = sphi 0, %s203
      %s221 = sphi 0, %s221
      %s223 = sphi 0, %s221
      %s224 = sphi 0, %s223
      %s238 = sphi 0, %s224
      %s242 = sphi 0, %s242
      %s244 = sphi 0, %s242
      %s245 = sphi 0, %s244
      %s259 = sphi 0, %s245
      %s263 = sphi 0, %s263
      %s265 = sphi 0, %s263
      %s266 = sphi 0, %s265
      %s280 = sphi 0, %s266
      %s284 = sphi 0, %s284
      %s286 = sphi 0, %s284
      %s287 = sphi 0, %s286
      %s301 = sphi 0, %s287
      %s305 = sphi 0, %s305
      %s307 = sphi 0, %s305
      %s308 = sphi 0, %s307
      %s322 = sphi 0, %s308
      %s326 = sphi 0, %s326
      %s328 = sphi 0, %s326
      %s329 = sphi 0, %s328
      %s343 = sphi 0, %s329
      %s347 = sphi 0, %s347
      %s349 = sphi 0, %s347
      %s350 = sphi 0, %s349
      %s364 = sphi 0, %s350
      %s368 = sphi 0, %s368
      %s370 = sphi 0, %s368
      %s371 = sphi 0, %s370
      %s385 = sphi 0, %s371
      %s389 = sphi 0, %s389
      %s391 = sphi 0, %s389
      %s392 = sphi 0, %s391
      %s406 = sphi 0, %s392
      %s410 = sphi 0, %s410
      %s412 = sphi 0, %s410
      %s413 = sphi 0, %s412
      %s427 = sphi 0, %s413
      %s431 = sphi 0, %s431
      %s433 = sphi 0, %s431
      %s434 = sphi 0, %s433
      %s448 = sphi 0, %s434
      %s452 = sphi 0, %s452
      %s454 = sphi 0, %s452
      %s455 = sphi 0, %s454
      %s469 = sphi 0, %s455
      %s473 = sphi 0, %s473
      %s475 = sphi 0, %s473
      %s476 = sphi 0, %s475
      %s490 = sphi 0, %s476
      %s494 = sphi 0, %s494
      %s496 = sphi 0, %s494
      %s497 = sphi 0, %s496
      %s511 = sphi 0, %s497
      %s517 = sphi 0, %s519
      %s520 = sphi 0, %s517
      %s521 = sphi 0, %s520
      %s537 = sphi 0, %s521
    $region4: #{tpu_custom_call.1} parent=1 // loop_header_branch
      %38 = sbr.rel (%p36) target = $region8
    $region5: #{tpu_custom_call.1} parent=1 // loop_body
      %s40 = ssub.s32 %s35, 1
      %s41 = ssub.s32 %s35, 2
      %s42 = sadd.s32 %s35, 1
      %s43 = ssub.s32 %s35, %s42
      %p44 = scmp.eq.s32.totalorder %s43, 0
      %s46 = sadd.s32 %s45, 1
      %s47 = scalar_select %p44, %s45, %s46
      %p50 = pneg %p44
      %p51 = scmp.eq.s32.totalorder %s35, 1
      %p52 = por %p50, %p51
      %p53 = scmp.ne.s32.totalorder %s45, %s48
      %p54 = scmp.eq.s32.totalorder %s35, 0
      %p55 = por %p53, %p54
      %p56 = scmp.ne.s32.totalorder %s45, %s48
      %p57 = scmp.eq.s32.totalorder %s40, 1
      %p58 = por %p56, %p57
      %p59 = scmp.ne.s32.totalorder %s48, %s49
      %p60 = scmp.eq.s32.totalorder %s40, 0
      %p61 = por %p59, %p60
      %p62 = scmp.ne.s32.totalorder %s48, %s49
      %p63 = scmp.eq.s32.totalorder %s41, 1
      %p64 = por %p62, %p63
      %p66 = scmp.ne.s32.totalorder %s49, %s65
      %p67 = scmp.eq.s32.totalorder %s41, 0
      %p68 = por %p66, %p67
      %s69 = ssub.s32 %s35, %s42
      %p70 = scmp.eq.s32.totalorder %s69, 0
      %s72 = sadd.s32 %s71, 1
      %s73 = scalar_select %p70, %s71, %s72
      %p76 = pneg %p70
      %p77 = scmp.eq.s32.totalorder %s35, 1
      %p78 = por %p76, %p77
      %p79 = scmp.ne.s32.totalorder %s71, %s74
      %p80 = scmp.eq.s32.totalorder %s35, 0
      %p81 = por %p79, %p80
      %p82 = scmp.ne.s32.totalorder %s71, %s74
      %p83 = scmp.eq.s32.totalorder %s40, 1
      %p84 = por %p82, %p83
      %p85 = scmp.ne.s32.totalorder %s74, %s75
      %p86 = scmp.eq.s32.totalorder %s40, 0
      %p87 = por %p85, %p86
      %p88 = scmp.ne.s32.totalorder %s74, %s75
      %p89 = scmp.eq.s32.totalorder %s41, 1
      %p90 = por %p88, %p89
      %p92 = scmp.ne.s32.totalorder %s75, %s91
      %p93 = scmp.eq.s32.totalorder %s41, 0
      %p94 = por %p92, %p93
      %s96 = sadd.s32 %s95, 1
      %p99 = scmp.eq.s32.totalorder %s35, 1
      %p100 = scmp.ne.s32.totalorder %s95, %s97
      %p101 = scmp.eq.s32.totalorder %s35, 0
      %p102 = por %p100, %p101
      %p103 = scmp.ne.s32.totalorder %s95, %s97
      %p104 = scmp.eq.s32.totalorder %s40, 1
      %p105 = por %p103, %p104
      %p106 = scmp.ne.s32.totalorder %s97, %s98
      %p107 = scmp.eq.s32.totalorder %s40, 0
      %p108 = por %p106, %p107
      %p109 = scmp.ne.s32.totalorder %s97, %s98
      %p110 = scmp.eq.s32.totalorder %s41, 1
      %p111 = por %p109, %p110
      %p113 = scmp.ne.s32.totalorder %s98, %s112
      %p114 = scmp.eq.s32.totalorder %s41, 0
      %p115 = por %p113, %p114
      %s117 = sadd.s32 %s116, 1
      %p120 = scmp.eq.s32.totalorder %s35, 1
      %p121 = scmp.ne.s32.totalorder %s116, %s118
      %p122 = scmp.eq.s32.totalorder %s35, 0
      %p123 = por %p121, %p122
      %p124 = scmp.ne.s32.totalorder %s116, %s118
      %p125 = scmp.eq.s32.totalorder %s40, 1
      %p126 = por %p124, %p125
      %p127 = scmp.ne.s32.totalorder %s118, %s119
      %p128 = scmp.eq.s32.totalorder %s40, 0
      %p129 = por %p127, %p128
      %p130 = scmp.ne.s32.totalorder %s118, %s119
      %p131 = scmp.eq.s32.totalorder %s41, 1
      %p132 = por %p130, %p131
      %p134 = scmp.ne.s32.totalorder %s119, %s133
      %p135 = scmp.eq.s32.totalorder %s41, 0
      %p136 = por %p134, %p135
      %s138 = sadd.s32 %s137, 1
      %p141 = scmp.eq.s32.totalorder %s35, 1
      %p142 = scmp.ne.s32.totalorder %s137, %s139
      %p143 = scmp.eq.s32.totalorder %s35, 0
      %p144 = por %p142, %p143
      %p145 = scmp.ne.s32.totalorder %s137, %s139
      %p146 = scmp.eq.s32.totalorder %s40, 1
      %p147 = por %p145, %p146
      %p148 = scmp.ne.s32.totalorder %s139, %s140
      %p149 = scmp.eq.s32.totalorder %s40, 0
      %p150 = por %p148, %p149
      %p151 = scmp.ne.s32.totalorder %s139, %s140
      %p152 = scmp.eq.s32.totalorder %s41, 1
      %p153 = por %p151, %p152
      %p155 = scmp.ne.s32.totalorder %s140, %s154
      %p156 = scmp.eq.s32.totalorder %s41, 0
      %p157 = por %p155, %p156
      %s159 = sadd.s32 %s158, 1
      %p162 = scmp.eq.s32.totalorder %s35, 1
      %p163 = scmp.ne.s32.totalorder %s158, %s160
      %p164 = scmp.eq.s32.totalorder %s35, 0
      %p165 = por %p163, %p164
      %p166 = scmp.ne.s32.totalorder %s158, %s160
      %p167 = scmp.eq.s32.totalorder %s40, 1
      %p168 = por %p166, %p167
      %p169 = scmp.ne.s32.totalorder %s160, %s161
      %p170 = scmp.eq.s32.totalorder %s40, 0
      %p171 = por %p169, %p170
      %p172 = scmp.ne.s32.totalorder %s160, %s161
      %p173 = scmp.eq.s32.totalorder %s41, 1
      %p174 = por %p172, %p173
      %p176 = scmp.ne.s32.totalorder %s161, %s175
      %p177 = scmp.eq.s32.totalorder %s41, 0
      %p178 = por %p176, %p177
      %s180 = sadd.s32 %s179, 1
      %p183 = scmp.eq.s32.totalorder %s35, 1
      %p184 = scmp.ne.s32.totalorder %s179, %s181
      %p185 = scmp.eq.s32.totalorder %s35, 0
      %p186 = por %p184, %p185
      %p187 = scmp.ne.s32.totalorder %s179, %s181
      %p188 = scmp.eq.s32.totalorder %s40, 1
      %p189 = por %p187, %p188
      %p190 = scmp.ne.s32.totalorder %s181, %s182
      %p191 = scmp.eq.s32.totalorder %s40, 0
      %p192 = por %p190, %p191
      %p193 = scmp.ne.s32.totalorder %s181, %s182
      %p194 = scmp.eq.s32.totalorder %s41, 1
      %p195 = por %p193, %p194
      %p197 = scmp.ne.s32.totalorder %s182, %s196
      %p198 = scmp.eq.s32.totalorder %s41, 0
      %p199 = por %p197, %p198
      %s201 = sadd.s32 %s200, 1
      %p204 = scmp.eq.s32.totalorder %s35, 1
      %p205 = scmp.ne.s32.totalorder %s200, %s202
      %p206 = scmp.eq.s32.totalorder %s35, 0
      %p207 = por %p205, %p206
      %p208 = scmp.ne.s32.totalorder %s200, %s202
      %p209 = scmp.eq.s32.totalorder %s40, 1
      %p210 = por %p208, %p209
      %p211 = scmp.ne.s32.totalorder %s202, %s203
      %p212 = scmp.eq.s32.totalorder %s40, 0
      %p213 = por %p211, %p212
      %p214 = scmp.ne.s32.totalorder %s202, %s203
      %p215 = scmp.eq.s32.totalorder %s41, 1
      %p216 = por %p214, %p215
      %p218 = scmp.ne.s32.totalorder %s203, %s217
      %p219 = scmp.eq.s32.totalorder %s41, 0
      %p220 = por %p218, %p219
      %s222 = sadd.s32 %s221, 1
      %p225 = scmp.eq.s32.totalorder %s35, 1
      %p226 = scmp.ne.s32.totalorder %s221, %s223
      %p227 = scmp.eq.s32.totalorder %s35, 0
      %p228 = por %p226, %p227
      %p229 = scmp.ne.s32.totalorder %s221, %s223
      %p230 = scmp.eq.s32.totalorder %s40, 1
      %p231 = por %p229, %p230
      %p232 = scmp.ne.s32.totalorder %s223, %s224
      %p233 = scmp.eq.s32.totalorder %s40, 0
      %p234 = por %p232, %p233
      %p235 = scmp.ne.s32.totalorder %s223, %s224
      %p236 = scmp.eq.s32.totalorder %s41, 1
      %p237 = por %p235, %p236
      %p239 = scmp.ne.s32.totalorder %s224, %s238
      %p240 = scmp.eq.s32.totalorder %s41, 0
      %p241 = por %p239, %p240
      %s243 = sadd.s32 %s242, 1
      %p246 = scmp.eq.s32.totalorder %s35, 1
      %p247 = scmp.ne.s32.totalorder %s242, %s244
      %p248 = scmp.eq.s32.totalorder %s35, 0
      %p249 = por %p247, %p248
      %p250 = scmp.ne.s32.totalorder %s242, %s244
      %p251 = scmp.eq.s32.totalorder %s40, 1
      %p252 = por %p250, %p251
      %p253 = scmp.ne.s32.totalorder %s244, %s245
      %p254 = scmp.eq.s32.totalorder %s40, 0
      %p255 = por %p253, %p254
      %p256 = scmp.ne.s32.totalorder %s244, %s245
      %p257 = scmp.eq.s32.totalorder %s41, 1
      %p258 = por %p256, %p257
      %p260 = scmp.ne.s32.totalorder %s245, %s259
      %p261 = scmp.eq.s32.totalorder %s41, 0
      %p262 = por %p260, %p261
      %s264 = sadd.s32 %s263, 1
      %p267 = scmp.eq.s32.totalorder %s35, 1
      %p268 = scmp.ne.s32.totalorder %s263, %s265
      %p269 = scmp.eq.s32.totalorder %s35, 0
      %p270 = por %p268, %p269
      %p271 = scmp.ne.s32.totalorder %s263, %s265
      %p272 = scmp.eq.s32.totalorder %s40, 1
      %p273 = por %p271, %p272
      %p274 = scmp.ne.s32.totalorder %s265, %s266
      %p275 = scmp.eq.s32.totalorder %s40, 0
      %p276 = por %p274, %p275
      %p277 = scmp.ne.s32.totalorder %s265, %s266
      %p278 = scmp.eq.s32.totalorder %s41, 1
      %p279 = por %p277, %p278
      %p281 = scmp.ne.s32.totalorder %s266, %s280
      %p282 = scmp.eq.s32.totalorder %s41, 0
      %p283 = por %p281, %p282
      %s285 = sadd.s32 %s284, 1
      %p288 = scmp.eq.s32.totalorder %s35, 1
      %p289 = scmp.ne.s32.totalorder %s284, %s286
      %p290 = scmp.eq.s32.totalorder %s35, 0
      %p291 = por %p289, %p290
      %p292 = scmp.ne.s32.totalorder %s284, %s286
      %p293 = scmp.eq.s32.totalorder %s40, 1
      %p294 = por %p292, %p293
      %p295 = scmp.ne.s32.totalorder %s286, %s287
      %p296 = scmp.eq.s32.totalorder %s40, 0
      %p297 = por %p295, %p296
      %p298 = scmp.ne.s32.totalorder %s286, %s287
      %p299 = scmp.eq.s32.totalorder %s41, 1
      %p300 = por %p298, %p299
      %p302 = scmp.ne.s32.totalorder %s287, %s301
      %p303 = scmp.eq.s32.totalorder %s41, 0
      %p304 = por %p302, %p303
      %s306 = sadd.s32 %s305, 1
      %p309 = scmp.eq.s32.totalorder %s35, 1
      %p310 = scmp.ne.s32.totalorder %s305, %s307
      %p311 = scmp.eq.s32.totalorder %s35, 0
      %p312 = por %p310, %p311
      %p313 = scmp.ne.s32.totalorder %s305, %s307
      %p314 = scmp.eq.s32.totalorder %s40, 1
      %p315 = por %p313, %p314
      %p316 = scmp.ne.s32.totalorder %s307, %s308
      %p317 = scmp.eq.s32.totalorder %s40, 0
      %p318 = por %p316, %p317
      %p319 = scmp.ne.s32.totalorder %s307, %s308
      %p320 = scmp.eq.s32.totalorder %s41, 1
      %p321 = por %p319, %p320
      %p323 = scmp.ne.s32.totalorder %s308, %s322
      %p324 = scmp.eq.s32.totalorder %s41, 0
      %p325 = por %p323, %p324
      %s327 = sadd.s32 %s326, 1
      %p330 = scmp.eq.s32.totalorder %s35, 1
      %p331 = scmp.ne.s32.totalorder %s326, %s328
      %p332 = scmp.eq.s32.totalorder %s35, 0
      %p333 = por %p331, %p332
      %p334 = scmp.ne.s32.totalorder %s326, %s328
      %p335 = scmp.eq.s32.totalorder %s40, 1
      %p336 = por %p334, %p335
      %p337 = scmp.ne.s32.totalorder %s328, %s329
      %p338 = scmp.eq.s32.totalorder %s40, 0
      %p339 = por %p337, %p338
      %p340 = scmp.ne.s32.totalorder %s328, %s329
      %p341 = scmp.eq.s32.totalorder %s41, 1
      %p342 = por %p340, %p341
      %p344 = scmp.ne.s32.totalorder %s329, %s343
      %p345 = scmp.eq.s32.totalorder %s41, 0
      %p346 = por %p344, %p345
      %s348 = sadd.s32 %s347, 1
      %p351 = scmp.eq.s32.totalorder %s35, 1
      %p352 = scmp.ne.s32.totalorder %s347, %s349
      %p353 = scmp.eq.s32.totalorder %s35, 0
      %p354 = por %p352, %p353
      %p355 = scmp.ne.s32.totalorder %s347, %s349
      %p356 = scmp.eq.s32.totalorder %s40, 1
      %p357 = por %p355, %p356
      %p358 = scmp.ne.s32.totalorder %s349, %s350
      %p359 = scmp.eq.s32.totalorder %s40, 0
      %p360 = por %p358, %p359
      %p361 = scmp.ne.s32.totalorder %s349, %s350
      %p362 = scmp.eq.s32.totalorder %s41, 1
      %p363 = por %p361, %p362
      %p365 = scmp.ne.s32.totalorder %s350, %s364
      %p366 = scmp.eq.s32.totalorder %s41, 0
      %p367 = por %p365, %p366
      %s369 = sadd.s32 %s368, 1
      %p372 = scmp.eq.s32.totalorder %s35, 1
      %p373 = scmp.ne.s32.totalorder %s368, %s370
      %p374 = scmp.eq.s32.totalorder %s35, 0
      %p375 = por %p373, %p374
      %p376 = scmp.ne.s32.totalorder %s368, %s370
      %p377 = scmp.eq.s32.totalorder %s40, 1
      %p378 = por %p376, %p377
      %p379 = scmp.ne.s32.totalorder %s370, %s371
      %p380 = scmp.eq.s32.totalorder %s40, 0
      %p381 = por %p379, %p380
      %p382 = scmp.ne.s32.totalorder %s370, %s371
      %p383 = scmp.eq.s32.totalorder %s41, 1
      %p384 = por %p382, %p383
      %p386 = scmp.ne.s32.totalorder %s371, %s385
      %p387 = scmp.eq.s32.totalorder %s41, 0
      %p388 = por %p386, %p387
      %s390 = sadd.s32 %s389, 1
      %p393 = scmp.eq.s32.totalorder %s35, 1
      %p394 = scmp.ne.s32.totalorder %s389, %s391
      %p395 = scmp.eq.s32.totalorder %s35, 0
      %p396 = por %p394, %p395
      %p397 = scmp.ne.s32.totalorder %s389, %s391
      %p398 = scmp.eq.s32.totalorder %s40, 1
      %p399 = por %p397, %p398
      %p400 = scmp.ne.s32.totalorder %s391, %s392
      %p401 = scmp.eq.s32.totalorder %s40, 0
      %p402 = por %p400, %p401
      %p403 = scmp.ne.s32.totalorder %s391, %s392
      %p404 = scmp.eq.s32.totalorder %s41, 1
      %p405 = por %p403, %p404
      %p407 = scmp.ne.s32.totalorder %s392, %s406
      %p408 = scmp.eq.s32.totalorder %s41, 0
      %p409 = por %p407, %p408
      %s411 = sadd.s32 %s410, 1
      %p414 = scmp.eq.s32.totalorder %s35, 1
      %p415 = scmp.ne.s32.totalorder %s410, %s412
      %p416 = scmp.eq.s32.totalorder %s35, 0
      %p417 = por %p415, %p416
      %p418 = scmp.ne.s32.totalorder %s410, %s412
      %p419 = scmp.eq.s32.totalorder %s40, 1
      %p420 = por %p418, %p419
      %p421 = scmp.ne.s32.totalorder %s412, %s413
      %p422 = scmp.eq.s32.totalorder %s40, 0
      %p423 = por %p421, %p422
      %p424 = scmp.ne.s32.totalorder %s412, %s413
      %p425 = scmp.eq.s32.totalorder %s41, 1
      %p426 = por %p424, %p425
      %p428 = scmp.ne.s32.totalorder %s413, %s427
      %p429 = scmp.eq.s32.totalorder %s41, 0
      %p430 = por %p428, %p429
      %s432 = sadd.s32 %s431, 1
      %p435 = scmp.eq.s32.totalorder %s35, 1
      %p436 = scmp.ne.s32.totalorder %s431, %s433
      %p437 = scmp.eq.s32.totalorder %s35, 0
      %p438 = por %p436, %p437
      %p439 = scmp.ne.s32.totalorder %s431, %s433
      %p440 = scmp.eq.s32.totalorder %s40, 1
      %p441 = por %p439, %p440
      %p442 = scmp.ne.s32.totalorder %s433, %s434
      %p443 = scmp.eq.s32.totalorder %s40, 0
      %p444 = por %p442, %p443
      %p445 = scmp.ne.s32.totalorder %s433, %s434
      %p446 = scmp.eq.s32.totalorder %s41, 1
      %p447 = por %p445, %p446
      %p449 = scmp.ne.s32.totalorder %s434, %s448
      %p450 = scmp.eq.s32.totalorder %s41, 0
      %p451 = por %p449, %p450
      %s453 = sadd.s32 %s452, 1
      %p456 = scmp.eq.s32.totalorder %s35, 1
      %p457 = scmp.ne.s32.totalorder %s452, %s454
      %p458 = scmp.eq.s32.totalorder %s35, 0
      %p459 = por %p457, %p458
      %p460 = scmp.ne.s32.totalorder %s452, %s454
      %p461 = scmp.eq.s32.totalorder %s40, 1
      %p462 = por %p460, %p461
      %p463 = scmp.ne.s32.totalorder %s454, %s455
      %p464 = scmp.eq.s32.totalorder %s40, 0
      %p465 = por %p463, %p464
      %p466 = scmp.ne.s32.totalorder %s454, %s455
      %p467 = scmp.eq.s32.totalorder %s41, 1
      %p468 = por %p466, %p467
      %p470 = scmp.ne.s32.totalorder %s455, %s469
      %p471 = scmp.eq.s32.totalorder %s41, 0
      %p472 = por %p470, %p471
      %s474 = sadd.s32 %s473, 1
      %p477 = scmp.eq.s32.totalorder %s35, 1
      %p478 = scmp.ne.s32.totalorder %s473, %s475
      %p479 = scmp.eq.s32.totalorder %s35, 0
      %p480 = por %p478, %p479
      %p481 = scmp.ne.s32.totalorder %s473, %s475
      %p482 = scmp.eq.s32.totalorder %s40, 1
      %p483 = por %p481, %p482
      %p484 = scmp.ne.s32.totalorder %s475, %s476
      %p485 = scmp.eq.s32.totalorder %s40, 0
      %p486 = por %p484, %p485
      %p487 = scmp.ne.s32.totalorder %s475, %s476
      %p488 = scmp.eq.s32.totalorder %s41, 1
      %p489 = por %p487, %p488
      %p491 = scmp.ne.s32.totalorder %s476, %s490
      %p492 = scmp.eq.s32.totalorder %s41, 0
      %p493 = por %p491, %p492
      %s495 = sadd.s32 %s494, 1
      %p498 = scmp.eq.s32.totalorder %s35, 1
      %p499 = scmp.ne.s32.totalorder %s494, %s496
      %p500 = scmp.eq.s32.totalorder %s35, 0
      %p501 = por %p499, %p500
      %p502 = scmp.ne.s32.totalorder %s494, %s496
      %p503 = scmp.eq.s32.totalorder %s40, 1
      %p504 = por %p502, %p503
      %p505 = scmp.ne.s32.totalorder %s496, %s497
      %p506 = scmp.eq.s32.totalorder %s40, 0
      %p507 = por %p505, %p506
      %p508 = scmp.ne.s32.totalorder %s496, %s497
      %p509 = scmp.eq.s32.totalorder %s41, 1
      %p510 = por %p508, %p509
      %p512 = scmp.ne.s32.totalorder %s497, %s511
      %p513 = scmp.eq.s32.totalorder %s41, 0
      %p514 = por %p512, %p513
      %s515 = ssub.s32 %s35, %s42
      %p516 = scmp.eq.s32.totalorder %s515, 0
      %s518 = sadd.s32 %s517, 1
      %s519 = scalar_select %p516, %s517, %s518
      %p522 = pneg %p516
      %p523 = scmp.eq.s32.totalorder %s35, 1
      %p524 = por %p522, %p523
      %p525 = scmp.ne.s32.totalorder %s517, %s520
      %p526 = scmp.eq.s32.totalorder %s35, 0
      %p527 = por %p525, %p526
      %p528 = scmp.ne.s32.totalorder %s517, %s520
      %p529 = scmp.eq.s32.totalorder %s40, 1
      %p530 = por %p528, %p529
      %p531 = scmp.ne.s32.totalorder %s520, %s521
      %p532 = scmp.eq.s32.totalorder %s40, 0
      %p533 = por %p531, %p532
      %p534 = scmp.ne.s32.totalorder %s520, %s521
      %p535 = scmp.eq.s32.totalorder %s41, 1
      %p536 = por %p534, %p535
      %p538 = scmp.ne.s32.totalorder %s521, %s537
      %p539 = scmp.eq.s32.totalorder %s41, 0
      %p540 = por %p538, %p539
      %p541 = scmp.le.s32.totalorder 1, %s35
      %p542 = scmp.lt.s32.totalorder %s35, 3
      %p543 = pnand %p541, %p542
      %p544 = pneg %p543
      // Predicated region
      $region9: #{tpu_custom_call.1} parent=5 // pred_check
        _
      $region10: #{tpu_custom_call.1} parent=5 // pred_check_branch
        %546 = sbr.rel (%p543) target = $region12
      $region11: #{tpu_custom_call.1} parent=5 // pred_region
        %s547 = ssub.s32 %s35, 1
        // Predicated region
        $region13: #{tpu_custom_call.1} parent=11 // pred_check
          %p548 = pneg %p108
        $region14: #{tpu_custom_call.1} parent=11 // pred_check_branch
          %550 = sbr.rel (%p548) target = $region16
        $region15: #{tpu_custom_call.1} parent=11 // pred_region
          %s552 = ssub.s32 512, 512
          %553 = vsyncadd [#allocation3], %s552
          %s554 = sshll.u32 [#allocation2], 4
          %s555 = int_to_ptr.vmem [resolvable:$true] %s554
          %560 = dma.hbm_to_vmem [thread:$0]  %s2, 512, %s555, [#allocation3], 128, 128, 8
        $region16: #{tpu_custom_call.1} parent=11 // pred_fallthru
          _
        // Predicated region
        $region17: #{tpu_custom_call.1} parent=11 // pred_check
          %p561 = pneg %p129
        $region18: #{tpu_custom_call.1} parent=11 // pred_check_branch
          %563 = sbr.rel (%p561) target = $region20
        $region19: #{tpu_custom_call.1} parent=11 // pred_region
          _
        $region20: #{tpu_custom_call.1} parent=11 // pred_fallthru
          _
        // Predicated region
        $region21: #{tpu_custom_call.1} parent=11 // pred_check
          %p564 = pneg %p150
        $region22: #{tpu_custom_call.1} parent=11 // pred_check_branch
          %566 = sbr.rel (%p564) target = $region24
        $region23: #{tpu_custom_call.1} parent=11 // pred_region
          _
        $region24: #{tpu_custom_call.1} parent=11 // pred_fallthru
          _
        // Predicated region
        $region25: #{tpu_custom_call.1} parent=11 // pred_check
          %p567 = pneg %p171
        $region26: #{tpu_custom_call.1} parent=11 // pred_check_branch
          %569 = sbr.rel (%p567) target = $region28
        $region27: #{tpu_custom_call.1} parent=11 // pred_region
          _
        $region28: #{tpu_custom_call.1} parent=11 // pred_fallthru
          _
        // Predicated region
        $region29: #{tpu_custom_call.1} parent=11 // pred_check
          %p570 = pneg %p192
        $region30: #{tpu_custom_call.1} parent=11 // pred_check_branch
          %572 = sbr.rel (%p570) target = $region32
        $region31: #{tpu_custom_call.1} parent=11 // pred_region
          %s574 = ssub.s32 2048, 2048
          %575 = vsyncadd [#allocation6], %s574
          %s576 = sshll.u32 [#allocation5], 4
          %s577 = int_to_ptr.vmem [resolvable:$true] %s576
          %582 = dma.hbm_to_vmem [thread:$0]  %s6, 2048, %s577, [#allocation6], 128, 128, 8
        $region32: #{tpu_custom_call.1} parent=11 // pred_fallthru
          _
        // Predicated region
        $region33: #{tpu_custom_call.1} parent=11 // pred_check
          %p583 = pneg %p213
        $region34: #{tpu_custom_call.1} parent=11 // pred_check_branch
          %585 = sbr.rel (%p583) target = $region36
        $region35: #{tpu_custom_call.1} parent=11 // pred_region
          _
        $region36: #{tpu_custom_call.1} parent=11 // pred_fallthru
          _
        // Predicated region
        $region37: #{tpu_custom_call.1} parent=11 // pred_check
          %p586 = pneg %p234
        $region38: #{tpu_custom_call.1} parent=11 // pred_check_branch
          %588 = sbr.rel (%p586) target = $region40
        $region39: #{tpu_custom_call.1} parent=11 // pred_region
          _
        $region40: #{tpu_custom_call.1} parent=11 // pred_fallthru
          _
        // Predicated region
        $region41: #{tpu_custom_call.1} parent=11 // pred_check
          %p589 = pneg %p255
        $region42: #{tpu_custom_call.1} parent=11 // pred_check_branch
          %591 = sbr.rel (%p589) target = $region44
        $region43: #{tpu_custom_call.1} parent=11 // pred_region
          _
        $region44: #{tpu_custom_call.1} parent=11 // pred_fallthru
          _
        // Predicated region
        $region45: #{tpu_custom_call.1} parent=11 // pred_check
          %p592 = pneg %p276
        $region46: #{tpu_custom_call.1} parent=11 // pred_check_branch
          %594 = sbr.rel (%p592) target = $region48
        $region47: #{tpu_custom_call.1} parent=11 // pred_region
          %s596 = ssub.s32 2048, 2048
          %597 = vsyncadd [#allocation6], %s596
          %s598 = sshll.u32 [#allocation7], 4
          %s599 = int_to_ptr.vmem [resolvable:$true] %s598
          %604 = dma.hbm_to_vmem [thread:$0]  %s10, 2048, %s599, [#allocation6], 128, 128, 8
        $region48: #{tpu_custom_call.1} parent=11 // pred_fallthru
          _
        // Predicated region
        $region49: #{tpu_custom_call.1} parent=11 // pred_check
          %p605 = pneg %p297
        $region50: #{tpu_custom_call.1} parent=11 // pred_check_branch
          %607 = sbr.rel (%p605) target = $region52
        $region51: #{tpu_custom_call.1} parent=11 // pred_region
          _
        $region52: #{tpu_custom_call.1} parent=11 // pred_fallthru
          _
        // Predicated region
        $region53: #{tpu_custom_call.1} parent=11 // pred_check
          %p608 = pneg %p318
        $region54: #{tpu_custom_call.1} parent=11 // pred_check_branch
          %610 = sbr.rel (%p608) target = $region56
        $region55: #{tpu_custom_call.1} parent=11 // pred_region
          _
        $region56: #{tpu_custom_call.1} parent=11 // pred_fallthru
          _
        // Predicated region
        $region57: #{tpu_custom_call.1} parent=11 // pred_check
          %p611 = pneg %p339
        $region58: #{tpu_custom_call.1} parent=11 // pred_check_branch
          %613 = sbr.rel (%p611) target = $region60
        $region59: #{tpu_custom_call.1} parent=11 // pred_region
          _
        $region60: #{tpu_custom_call.1} parent=11 // pred_fallthru
          _
        // Predicated region
        $region61: #{tpu_custom_call.1} parent=11 // pred_check
          %p614 = pneg %p360
        $region62: #{tpu_custom_call.1} parent=11 // pred_check_branch
          %616 = sbr.rel (%p614) target = $region64
        $region63: #{tpu_custom_call.1} parent=11 // pred_region
          %s618 = ssub.s32 2048, 2048
          %619 = vsyncadd [#allocation9], %s618
          %s620 = sshll.u32 [#allocation8], 4
          %s621 = int_to_ptr.vmem [resolvable:$true] %s620
          %626 = dma.hbm_to_vmem [thread:$0]  %s14, 2048, %s621, [#allocation9], 128, 128, 8
        $region64: #{tpu_custom_call.1} parent=11 // pred_fallthru
          _
        // Predicated region
        $region65: #{tpu_custom_call.1} parent=11 // pred_check
          %p627 = pneg %p381
        $region66: #{tpu_custom_call.1} parent=11 // pred_check_branch
          %629 = sbr.rel (%p627) target = $region68
        $region67: #{tpu_custom_call.1} parent=11 // pred_region
          _
        $region68: #{tpu_custom_call.1} parent=11 // pred_fallthru
          _
        // Predicated region
        $region69: #{tpu_custom_call.1} parent=11 // pred_check
          %p630 = pneg %p402
        $region70: #{tpu_custom_call.1} parent=11 // pred_check_branch
          %632 = sbr.rel (%p630) target = $region72
        $region71: #{tpu_custom_call.1} parent=11 // pred_region
          _
        $region72: #{tpu_custom_call.1} parent=11 // pred_fallthru
          _
        // Predicated region
        $region73: #{tpu_custom_call.1} parent=11 // pred_check
          %p633 = pneg %p423
        $region74: #{tpu_custom_call.1} parent=11 // pred_check_branch
          %635 = sbr.rel (%p633) target = $region76
        $region75: #{tpu_custom_call.1} parent=11 // pred_region
          _
        $region76: #{tpu_custom_call.1} parent=11 // pred_fallthru
          _
        // Predicated region
        $region77: #{tpu_custom_call.1} parent=11 // pred_check
          %p636 = pneg %p444
        $region78: #{tpu_custom_call.1} parent=11 // pred_check_branch
          %638 = sbr.rel (%p636) target = $region80
        $region79: #{tpu_custom_call.1} parent=11 // pred_region
          %s640 = ssub.s32 2048, 2048
          %641 = vsyncadd [#allocation9], %s640
          %s642 = sshll.u32 [#allocation10], 4
          %s643 = int_to_ptr.vmem [resolvable:$true] %s642
          %648 = dma.hbm_to_vmem [thread:$0]  %s18, 2048, %s643, [#allocation9], 128, 128, 8
        $region80: #{tpu_custom_call.1} parent=11 // pred_fallthru
          _
        // Predicated region
        $region81: #{tpu_custom_call.1} parent=11 // pred_check
          %p649 = pneg %p465
        $region82: #{tpu_custom_call.1} parent=11 // pred_check_branch
          %651 = sbr.rel (%p649) target = $region84
        $region83: #{tpu_custom_call.1} parent=11 // pred_region
          _
        $region84: #{tpu_custom_call.1} parent=11 // pred_fallthru
          _
        // Predicated region
        $region85: #{tpu_custom_call.1} parent=11 // pred_check
          %p652 = pneg %p486
        $region86: #{tpu_custom_call.1} parent=11 // pred_check_branch
          %654 = sbr.rel (%p652) target = $region88
        $region87: #{tpu_custom_call.1} parent=11 // pred_region
          %s656 = ssub.s32 6144, 6144
          %657 = vsyncadd [#allocation12], %s656
          %s658 = sshll.u32 [#allocation11], 4
          %s659 = int_to_ptr.vmem [resolvable:$true] %s658
          %664 = dma.hbm_to_vmem [thread:$0]  %s20, 6144, %s659, [#allocation12], 384, 384, 24
        $region88: #{tpu_custom_call.1} parent=11 // pred_fallthru
          _
        // Predicated region
        $region89: #{tpu_custom_call.1} parent=11 // pred_check
          %p665 = pneg %p507
        $region90: #{tpu_custom_call.1} parent=11 // pred_check_branch
          %667 = sbr.rel (%p665) target = $region92
        $region91: #{tpu_custom_call.1} parent=11 // pred_region
          _
        $region92: #{tpu_custom_call.1} parent=11 // pred_fallthru
          _
      $region12: #{tpu_custom_call.1} parent=5 // pred_fallthru
        _
      %p668 = scmp.lt.s32.totalorder %s35, 2
      // Predicated region
      $region93: #{tpu_custom_call.1} parent=5 // pred_check
        %p669 = pneg %p668
      $region94: #{tpu_custom_call.1} parent=5 // pred_check_branch
        %671 = sbr.rel (%p669) target = $region96
      $region95: #{tpu_custom_call.1} parent=5 // pred_region
        // Predicated region
        $region97: #{tpu_custom_call.1} parent=95 // pred_check
          %p672 = pneg %p55
        $region98: #{tpu_custom_call.1} parent=95 // pred_check_branch
          %674 = sbr.rel (%p672) target = $region100
        $region99: #{tpu_custom_call.1} parent=95 // pred_region
          %p675 = scmp.lt.s32.totalorder %s35, 1
          %s676 = scalar_select %p675, %s35, 1
          %s677 = smul.addr %s676, 8
          %s678 = scalar_lea.vmem %s0, %s677
        $region100: #{tpu_custom_call.1} parent=95 // pred_fallthru
          _
        // Predicated region
        $region101: #{tpu_custom_call.1} parent=95 // pred_check
          %p679 = pneg %p81
        $region102: #{tpu_custom_call.1} parent=95 // pred_check_branch
          %681 = sbr.rel (%p679) target = $region104
        $region103: #{tpu_custom_call.1} parent=95 // pred_region
          %p682 = scmp.lt.s32.totalorder %s35, 1
          %s683 = scalar_select %p682, %s35, 1
          %s684 = smul.addr %s683, 8
          %s685 = scalar_lea.vmem %s1, %s684
        $region104: #{tpu_custom_call.1} parent=95 // pred_fallthru
          _
      $region96: #{tpu_custom_call.1} parent=5 // pred_fallthru
        _
      %p686 = scmp.le.s32.totalorder 1, %s35
      %p687 = scmp.lt.s32.totalorder %s35, 3
      %p688 = pnand %p686, %p687
      %p689 = pneg %p688
      // Predicated region
      $region105: #{tpu_custom_call.1} parent=5 // pred_check
        _
      $region106: #{tpu_custom_call.1} parent=5 // pred_check_branch
        %691 = sbr.rel (%p688) target = $region108
      $region107: #{tpu_custom_call.1} parent=5 // pred_region
        %s692 = ssub.s32 %s35, 1
        // Predicated region
        $region109: #{tpu_custom_call.1} parent=107 // pred_check
          %p693 = pneg %p108
        $region110: #{tpu_custom_call.1} parent=107 // pred_check_branch
          %695 = sbr.rel (%p693) target = $region112
        $region111: #{tpu_custom_call.1} parent=107 // pred_region
          %696 = dma.done [#allocation3], 512
        $region112: #{tpu_custom_call.1} parent=107 // pred_fallthru
          _
        // Predicated region
        $region113: #{tpu_custom_call.1} parent=107 // pred_check
          %p697 = pneg %p192
        $region114: #{tpu_custom_call.1} parent=107 // pred_check_branch
          %699 = sbr.rel (%p697) target = $region116
        $region115: #{tpu_custom_call.1} parent=107 // pred_region
          %700 = dma.done [#allocation6], 2048
        $region116: #{tpu_custom_call.1} parent=107 // pred_fallthru
          _
        // Predicated region
        $region117: #{tpu_custom_call.1} parent=107 // pred_check
          %p701 = pneg %p276
        $region118: #{tpu_custom_call.1} parent=107 // pred_check_branch
          %703 = sbr.rel (%p701) target = $region120
        $region119: #{tpu_custom_call.1} parent=107 // pred_region
          %704 = dma.done [#allocation6], 2048
        $region120: #{tpu_custom_call.1} parent=107 // pred_fallthru
          _
        // Predicated region
        $region121: #{tpu_custom_call.1} parent=107 // pred_check
          %p705 = pneg %p360
        $region122: #{tpu_custom_call.1} parent=107 // pred_check_branch
          %707 = sbr.rel (%p705) target = $region124
        $region123: #{tpu_custom_call.1} parent=107 // pred_region
          %708 = dma.done [#allocation9], 2048
        $region124: #{tpu_custom_call.1} parent=107 // pred_fallthru
          _
        // Predicated region
        $region125: #{tpu_custom_call.1} parent=107 // pred_check
          %p709 = pneg %p444
        $region126: #{tpu_custom_call.1} parent=107 // pred_check_branch
          %711 = sbr.rel (%p709) target = $region128
        $region127: #{tpu_custom_call.1} parent=107 // pred_region
          %712 = dma.done [#allocation9], 2048
        $region128: #{tpu_custom_call.1} parent=107 // pred_fallthru
          _
        // Predicated region
        $region129: #{tpu_custom_call.1} parent=107 // pred_check
          %p713 = pneg %p486
        $region130: #{tpu_custom_call.1} parent=107 // pred_check_branch
          %715 = sbr.rel (%p713) target = $region132
        $region131: #{tpu_custom_call.1} parent=107 // pred_region
          %716 = dma.done [#allocation12], 6144
        $region132: #{tpu_custom_call.1} parent=107 // pred_fallthru
          _
        %p717 = scmp.lt.s32.totalorder %s40, 1
        %s718 = scalar_select %p717, %s40, 1
        %s719 = smul.addr %s718, 8
        %s720 = scalar_lea.vmem %s0, %s719
        %p721 = pneg %p61
        %p722 = pneg %p58
        %p723 = scmp.lt.s32.totalorder %s40, 1
        %s724 = scalar_select %p723, %s40, 1
        %s725 = smul.addr %s724, 8
        %s726 = scalar_lea.vmem %s1, %s725
        %p727 = pneg %p87
        %p728 = pneg %p84
        %p729 = pneg %p108
        %p730 = pneg %p105
        %p731 = pneg %p129
        %p732 = pneg %p126
        %p733 = pneg %p150
        %p734 = pneg %p147
        %p735 = pneg %p171
        %p736 = pneg %p168
        %p737 = pneg %p192
        %p738 = pneg %p189
        %p739 = pneg %p213
        %p740 = pneg %p210
        %p741 = pneg %p234
        %p742 = pneg %p231
        %p743 = pneg %p255
        %p744 = pneg %p252
        %p745 = pneg %p276
        %p746 = pneg %p273
        %p747 = pneg %p297
        %p748 = pneg %p294
        %p749 = pneg %p318
        %p750 = pneg %p315
        %p751 = pneg %p339
        %p752 = pneg %p336
        %p753 = pneg %p360
        %p754 = pneg %p357
        %p755 = pneg %p381
        %p756 = pneg %p378
        %p757 = pneg %p402
        %p758 = pneg %p399
        %p759 = pneg %p423
        %p760 = pneg %p420
        %p761 = pneg %p444
        %p762 = pneg %p441
        %p763 = pneg %p465
        %p764 = pneg %p462
        %p765 = pneg %p486
        %p766 = pneg %p483
        %p767 = pneg %p507
        %p768 = pneg %p504
        %p769 = pneg %p533
        %p770 = pneg %p530
        %s771 = sand.u32 %s520, 1
        %s772 = scalar_lea.sflag [#allocation4], %s771
        %s773 = sand.u32 %s520, 1
        %s774 = smul.addr %s773, 8
        %s775 = scalar_lea.vmem [#allocation13], %s774
        %p776 = scmp.lt.s32.totalorder %s40, 1
        %s777 = scalar_select %p776, %s40, 1
        %s778 = smul.addr %s777, 8
        %s779 = scalar_lea.vmem %s0, %s778
        %p780 = scmp.lt.s32.totalorder %s40, 1
        %s781 = scalar_select %p780, %s40, 1
        %s782 = smul.addr %s781, 8
        %s783 = scalar_lea.vmem %s1, %s782
        %v784 = vld [vmem:[%s779] sm:$0xff]
        %v785 = vld [vmem:[#allocation2] sm:$0xff]
        %v786 = vld [vmem:[#allocation2 + $0x8] sm:$0xff]
        %v787 = vld [vmem:[#allocation2 + $0x10] sm:$0xff]
        %v788 = vld [vmem:[#allocation2 + $0x18] sm:$0xff]
        %v789 = vld [vmem:[%s3] sm:$0x1]
        %v791 = vlaneseq
        %v792 = vshrl.u32 %v791, 7
        %v793 = vsub.s32 0, %v792
        %v794 = vrot.slane %v789, %v793
        %vm796 = vcmask 261120
        %v798 = vsel %vm796, %v784, 0
        %800 = vmatprep.subr.mxu0 0.0
        %801 = vmatpush1.msra.mxu0 0.0
        %802 = vmatprep.subr.mxu0 0.0
        %803 = vmatpush1.msra.mxu0 0.0
        %804 = vmatprep.subr.mxu0 0.0
        %805 = vmatpush1.msra.mxu0 0.0
        %806 = vmatprep.subr.mxu0 0.0
        %807 = vmatpush1.msra.mxu0 0.0
        %808 = vmatprep.subr.mxu0 0.0
        %809 = vmatpush1.msra.mxu0 0.0
        %810 = vmatprep.subr.mxu0 0.0
        %811 = vmatpush1.msra.mxu0 0.0
        %812 = vmatprep.subr.mxu0 0.0
        %813 = vmatpush1.msra.mxu0 0.0
        %814 = vmatprep.subr.mxu0 0.0
        %815 = vmatpush1.msra.mxu0 0.0
        %816 = vmatprep.subr.mxu0 0.0
        %817 = vmatpush1.msra.mxu0 0.0
        %818 = vmatprep.subr.mxu0 0.0
        %819 = vmatpush1.msra.mxu0 0.0
        %820 = vmatprep.subr.mxu0 0.0
        %821 = vmatpush1.msra.mxu0 0.0
        %822 = vmatprep.subr.mxu0 0.0
        %823 = vmatpush1.msra.mxu0 0.0
        %824 = vmatprep.subr.mxu0 0.0
        %825 = vmatpush1.msra.mxu0 %v788
        %826 = vmatprep.subr.mxu0 0.0
        %827 = vmatpush1.msra.mxu0 %v787
        %828 = vmatprep.subr.mxu0 0.0
        %829 = vmatpush1.msra.mxu0 %v786
        %830 = vmatprep.subr.mxu0 0.0
        %831 = vmatpush1.msra.mxu0 %v785
        %832 = vmatprep.subr.mxu0 0.0
        %833 = vmatpush2.msra.mxu0 0.0
        %834 = vmatprep.subr.mxu0 0.0
        %835 = vmatpush2.msra.mxu0 0.0
        %836 = vmatprep.subr.mxu0 0.0
        %837 = vmatpush2.msra.mxu0 0.0
        %838 = vmatprep.subr.mxu0 0.0
        %839 = vmatpush2.msra.mxu0 0.0
        %840 = vmatprep.subr.mxu0 0.0
        %841 = vmatpush2.msra.mxu0 0.0
        %842 = vmatprep.subr.mxu0 0.0
        %843 = vmatpush2.msra.mxu0 0.0
        %844 = vmatprep.subr.mxu0 0.0
        %845 = vmatpush2.msra.mxu0 0.0
        %846 = vmatprep.subr.mxu0 0.0
        %847 = vmatpush2.msra.mxu0 0.0
        %848 = vmatprep.subr.mxu0 0.0
        %849 = vmatpush2.msra.mxu0 0.0
        %850 = vmatprep.subr.mxu0 0.0
        %851 = vmatpush2.msra.mxu0 0.0
        %852 = vmatprep.subr.mxu0 0.0
        %853 = vmatpush2.msra.mxu0 0.0
        %854 = vmatprep.subr.mxu0 0.0
        %855 = vmatpush2.msra.mxu0 0.0
        %856 = vmatprep.subr.mxu0 0.0
        %857 = vmatpush2.msra.mxu0 0.0
        %858 = vmatprep.subr.mxu0 0.0
        %859 = vmatpush2.msra.mxu0 0.0
        %860 = vmatprep.subr.mxu0 0.0
        %861 = vmatpush2.msra.mxu0 0.0
        %862 = vmatprep.subr.mxu0 0.0
        %863 = vmatpush2.msra.mxu0 0.0
        %864 = vmatprep.mubr.f32.mxu0 0.0
        %865 = vmatmul.mubr.f32.gmra.mxu0 %v798
        %v866 = vpop.f32.mrf.mxu0
        %v867 = vadd.f32 %v794, %v866
        %v868 = vpop.f32.mrf.mxu0
        %869 = vdwg.mxu0
        %v870 = vld [vmem:[%s4] sm:$0x1]
        %v872 = vlaneseq
        %v873 = vshrl.u32 %v872, 7
        %v874 = vsub.s32 0, %v873
        %v875 = vrot.slane %v870, %v874
        %v877 = vmul.f32 %v867, %v875
        %v878 = vld [vmem:[%s5] sm:$0x1]
        %v880 = vlaneseq
        %v881 = vshrl.u32 %v880, 7
        %v882 = vsub.s32 0, %v881
        %v883 = vrot.slane %v878, %v882
        %v885 = vadd.f32 %v877, %v883
        %vm886 = vcmp.ge.f32.partialorder %v885, 0.0
        %v887 = vmul.f32 %v885, 0.01
        %v888 = vsel %vm886, %v885, %v887
        %v889 = vld [vmem:[#allocation5] sm:$0xff]
        %v890 = vld [vmem:[#allocation5 + $0x8] sm:$0xff]
        %v891 = vld [vmem:[#allocation5 + $0x10] sm:$0xff]
        %v892 = vld [vmem:[#allocation5 + $0x18] sm:$0xff]
        %v893 = vld [vmem:[#allocation5 + $0x20] sm:$0xff]
        %v894 = vld [vmem:[#allocation5 + $0x28] sm:$0xff]
        %v895 = vld [vmem:[#allocation5 + $0x30] sm:$0xff]
        %v896 = vld [vmem:[#allocation5 + $0x38] sm:$0xff]
        %v897 = vld [vmem:[#allocation5 + $0x40] sm:$0xff]
        %v898 = vld [vmem:[#allocation5 + $0x48] sm:$0xff]
        %v899 = vld [vmem:[#allocation5 + $0x50] sm:$0xff]
        %v900 = vld [vmem:[#allocation5 + $0x58] sm:$0xff]
        %v901 = vld [vmem:[#allocation5 + $0x60] sm:$0xff]
        %v902 = vld [vmem:[#allocation5 + $0x68] sm:$0xff]
        %v903 = vld [vmem:[#allocation5 + $0x70] sm:$0xff]
        %v904 = vld [vmem:[#allocation5 + $0x78] sm:$0xff]
        %v905 = vld [vmem:[%s7] sm:$0x1]
        %v907 = vlaneseq
        %v908 = vshrl.u32 %v907, 7
        %v909 = vsub.s32 0, %v908
        %v910 = vrot.slane %v905, %v909
        %912 = vmatprep.subr.mxu0 0.0
        %913 = vmatpush1.msra.mxu0 %v904
        %914 = vmatprep.subr.mxu0 0.0
        %915 = vmatpush1.msra.mxu0 %v903
        %916 = vmatprep.subr.mxu0 0.0
        %917 = vmatpush1.msra.mxu0 %v902
        %918 = vmatprep.subr.mxu0 0.0
        %919 = vmatpush1.msra.mxu0 %v901
        %920 = vmatprep.subr.mxu0 0.0
        %921 = vmatpush1.msra.mxu0 %v900
        %922 = vmatprep.subr.mxu0 0.0
        %923 = vmatpush1.msra.mxu0 %v899
        %924 = vmatprep.subr.mxu0 0.0
        %925 = vmatpush1.msra.mxu0 %v898
        %926 = vmatprep.subr.mxu0 0.0
        %927 = vmatpush1.msra.mxu0 %v897
        %928 = vmatprep.subr.mxu0 0.0
        %929 = vmatpush1.msra.mxu0 %v896
        %930 = vmatprep.subr.mxu0 0.0
        %931 = vmatpush1.msra.mxu0 %v895
        %932 = vmatprep.subr.mxu0 0.0
        %933 = vmatpush1.msra.mxu0 %v894
        %934 = vmatprep.subr.mxu0 0.0
        %935 = vmatpush1.msra.mxu0 %v893
        %936 = vmatprep.subr.mxu0 0.0
        %937 = vmatpush1.msra.mxu0 %v892
        %938 = vmatprep.subr.mxu0 0.0
        %939 = vmatpush1.msra.mxu0 %v891
        %940 = vmatprep.subr.mxu0 0.0
        %941 = vmatpush1.msra.mxu0 %v890
        %942 = vmatprep.subr.mxu0 0.0
        %943 = vmatpush1.msra.mxu0 %v889
        %944 = vmatprep.subr.mxu0 0.0
        %945 = vmatpush2.msra.mxu0 0.0
        %946 = vmatprep.subr.mxu0 0.0
        %947 = vmatpush2.msra.mxu0 0.0
        %948 = vmatprep.subr.mxu0 0.0
        %949 = vmatpush2.msra.mxu0 0.0
        %950 = vmatprep.subr.mxu0 0.0
        %951 = vmatpush2.msra.mxu0 0.0
        %952 = vmatprep.subr.mxu0 0.0
        %953 = vmatpush2.msra.mxu0 0.0
        %954 = vmatprep.subr.mxu0 0.0
        %955 = vmatpush2.msra.mxu0 0.0
        %956 = vmatprep.subr.mxu0 0.0
        %957 = vmatpush2.msra.mxu0 0.0
        %958 = vmatprep.subr.mxu0 0.0
        %959 = vmatpush2.msra.mxu0 0.0
        %960 = vmatprep.subr.mxu0 0.0
        %961 = vmatpush2.msra.mxu0 0.0
        %962 = vmatprep.subr.mxu0 0.0
        %963 = vmatpush2.msra.mxu0 0.0
        %964 = vmatprep.subr.mxu0 0.0
        %965 = vmatpush2.msra.mxu0 0.0
        %966 = vmatprep.subr.mxu0 0.0
        %967 = vmatpush2.msra.mxu0 0.0
        %968 = vmatprep.subr.mxu0 0.0
        %969 = vmatpush2.msra.mxu0 0.0
        %970 = vmatprep.subr.mxu0 0.0
        %971 = vmatpush2.msra.mxu0 0.0
        %972 = vmatprep.subr.mxu0 0.0
        %973 = vmatpush2.msra.mxu0 0.0
        %974 = vmatprep.subr.mxu0 0.0
        %975 = vmatpush2.msra.mxu0 0.0
        %976 = vmatprep.mubr.f32.mxu0 0.0
        %977 = vmatmul.mubr.f32.gmra.mxu0 %v888
        %v978 = vpop.f32.mrf.mxu0
        %v979 = vadd.f32 %v910, %v978
        %v980 = vpop.f32.mrf.mxu0
        %981 = vdwg.mxu0
        %v982 = vld [vmem:[%s8] sm:$0x1]
        %v984 = vlaneseq
        %v985 = vshrl.u32 %v984, 7
        %v986 = vsub.s32 0, %v985
        %v987 = vrot.slane %v982, %v986
        %v989 = vmul.f32 %v979, %v987
        %v990 = vld [vmem:[%s9] sm:$0x1]
        %v992 = vlaneseq
        %v993 = vshrl.u32 %v992, 7
        %v994 = vsub.s32 0, %v993
        %v995 = vrot.slane %v990, %v994
        %v997 = vadd.f32 %v989, %v995
        %vm998 = vcmp.ge.f32.partialorder %v997, 0.0
        %v999 = vmul.f32 %v997, 0.01
        %v1000 = vsel %vm998, %v997, %v999
        %v1001 = vld [vmem:[#allocation7] sm:$0xff]
        %v1002 = vld [vmem:[#allocation7 + $0x8] sm:$0xff]
        %v1003 = vld [vmem:[#allocation7 + $0x10] sm:$0xff]
        %v1004 = vld [vmem:[#allocation7 + $0x18] sm:$0xff]
        %v1005 = vld [vmem:[#allocation7 + $0x20] sm:$0xff]
        %v1006 = vld [vmem:[#allocation7 + $0x28] sm:$0xff]
        %v1007 = vld [vmem:[#allocation7 + $0x30] sm:$0xff]
        %v1008 = vld [vmem:[#allocation7 + $0x38] sm:$0xff]
        %v1009 = vld [vmem:[#allocation7 + $0x40] sm:$0xff]
        %v1010 = vld [vmem:[#allocation7 + $0x48] sm:$0xff]
        %v1011 = vld [vmem:[#allocation7 + $0x50] sm:$0xff]
        %v1012 = vld [vmem:[#allocation7 + $0x58] sm:$0xff]
        %v1013 = vld [vmem:[#allocation7 + $0x60] sm:$0xff]
        %v1014 = vld [vmem:[#allocation7 + $0x68] sm:$0xff]
        %v1015 = vld [vmem:[#allocation7 + $0x70] sm:$0xff]
        %v1016 = vld [vmem:[#allocation7 + $0x78] sm:$0xff]
        %v1017 = vld [vmem:[%s11] sm:$0x1]
        %v1019 = vlaneseq
        %v1020 = vshrl.u32 %v1019, 7
        %v1021 = vsub.s32 0, %v1020
        %v1022 = vrot.slane %v1017, %v1021
        %1024 = vmatprep.subr.mxu0 0.0
        %1025 = vmatpush1.msra.mxu0 %v1016
        %1026 = vmatprep.subr.mxu0 0.0
        %1027 = vmatpush1.msra.mxu0 %v1015
        %1028 = vmatprep.subr.mxu0 0.0
        %1029 = vmatpush1.msra.mxu0 %v1014
        %1030 = vmatprep.subr.mxu0 0.0
        %1031 = vmatpush1.msra.mxu0 %v1013
        %1032 = vmatprep.subr.mxu0 0.0
        %1033 = vmatpush1.msra.mxu0 %v1012
        %1034 = vmatprep.subr.mxu0 0.0
        %1035 = vmatpush1.msra.mxu0 %v1011
        %1036 = vmatprep.subr.mxu0 0.0
        %1037 = vmatpush1.msra.mxu0 %v1010
        %1038 = vmatprep.subr.mxu0 0.0
        %1039 = vmatpush1.msra.mxu0 %v1009
        %1040 = vmatprep.subr.mxu0 0.0
        %1041 = vmatpush1.msra.mxu0 %v1008
        %1042 = vmatprep.subr.mxu0 0.0
        %1043 = vmatpush1.msra.mxu0 %v1007
        %1044 = vmatprep.subr.mxu0 0.0
        %1045 = vmatpush1.msra.mxu0 %v1006
        %1046 = vmatprep.subr.mxu0 0.0
        %1047 = vmatpush1.msra.mxu0 %v1005
        %1048 = vmatprep.subr.mxu0 0.0
        %1049 = vmatpush1.msra.mxu0 %v1004
        %1050 = vmatprep.subr.mxu0 0.0
        %1051 = vmatpush1.msra.mxu0 %v1003
        %1052 = vmatprep.subr.mxu0 0.0
        %1053 = vmatpush1.msra.mxu0 %v1002
        %1054 = vmatprep.subr.mxu0 0.0
        %1055 = vmatpush1.msra.mxu0 %v1001
        %1056 = vmatprep.subr.mxu0 0.0
        %1057 = vmatpush2.msra.mxu0 0.0
        %1058 = vmatprep.subr.mxu0 0.0
        %1059 = vmatpush2.msra.mxu0 0.0
        %1060 = vmatprep.subr.mxu0 0.0
        %1061 = vmatpush2.msra.mxu0 0.0
        %1062 = vmatprep.subr.mxu0 0.0
        %1063 = vmatpush2.msra.mxu0 0.0
        %1064 = vmatprep.subr.mxu0 0.0
        %1065 = vmatpush2.msra.mxu0 0.0
        %1066 = vmatprep.subr.mxu0 0.0
        %1067 = vmatpush2.msra.mxu0 0.0
        %1068 = vmatprep.subr.mxu0 0.0
        %1069 = vmatpush2.msra.mxu0 0.0
        %1070 = vmatprep.subr.mxu0 0.0
        %1071 = vmatpush2.msra.mxu0 0.0
        %1072 = vmatprep.subr.mxu0 0.0
        %1073 = vmatpush2.msra.mxu0 0.0
        %1074 = vmatprep.subr.mxu0 0.0
        %1075 = vmatpush2.msra.mxu0 0.0
        %1076 = vmatprep.subr.mxu0 0.0
        %1077 = vmatpush2.msra.mxu0 0.0
        %1078 = vmatprep.subr.mxu0 0.0
        %1079 = vmatpush2.msra.mxu0 0.0
        %1080 = vmatprep.subr.mxu0 0.0
        %1081 = vmatpush2.msra.mxu0 0.0
        %1082 = vmatprep.subr.mxu0 0.0
        %1083 = vmatpush2.msra.mxu0 0.0
        %1084 = vmatprep.subr.mxu0 0.0
        %1085 = vmatpush2.msra.mxu0 0.0
        %1086 = vmatprep.subr.mxu0 0.0
        %1087 = vmatpush2.msra.mxu0 0.0
        %1088 = vmatprep.mubr.f32.mxu0 0.0
        %1089 = vmatmul.mubr.f32.gmra.mxu0 %v1000
        %v1090 = vpop.f32.mrf.mxu0
        %v1091 = vadd.f32 %v1022, %v1090
        %v1092 = vpop.f32.mrf.mxu0
        %1093 = vdwg.mxu0
        %v1094 = vadd.f32 %v867, %v1091
        %v1095 = vld [vmem:[%s12] sm:$0x1]
        %v1097 = vlaneseq
        %v1098 = vshrl.u32 %v1097, 7
        %v1099 = vsub.s32 0, %v1098
        %v1100 = vrot.slane %v1095, %v1099
        %v1102 = vmul.f32 %v1094, %v1100
        %v1103 = vld [vmem:[%s13] sm:$0x1]
        %v1105 = vlaneseq
        %v1106 = vshrl.u32 %v1105, 7
        %v1107 = vsub.s32 0, %v1106
        %v1108 = vrot.slane %v1103, %v1107
        %v1110 = vadd.f32 %v1102, %v1108
        %vm1111 = vcmp.ge.f32.partialorder %v1110, 0.0
        %v1112 = vmul.f32 %v1110, 0.01
        %v1113 = vsel %vm1111, %v1110, %v1112
        %v1114 = vld [vmem:[#allocation8] sm:$0xff]
        %v1115 = vld [vmem:[#allocation8 + $0x8] sm:$0xff]
        %v1116 = vld [vmem:[#allocation8 + $0x10] sm:$0xff]
        %v1117 = vld [vmem:[#allocation8 + $0x18] sm:$0xff]
        %v1118 = vld [vmem:[#allocation8 + $0x20] sm:$0xff]
        %v1119 = vld [vmem:[#allocation8 + $0x28] sm:$0xff]
        %v1120 = vld [vmem:[#allocation8 + $0x30] sm:$0xff]
        %v1121 = vld [vmem:[#allocation8 + $0x38] sm:$0xff]
        %v1122 = vld [vmem:[#allocation8 + $0x40] sm:$0xff]
        %v1123 = vld [vmem:[#allocation8 + $0x48] sm:$0xff]
        %v1124 = vld [vmem:[#allocation8 + $0x50] sm:$0xff]
        %v1125 = vld [vmem:[#allocation8 + $0x58] sm:$0xff]
        %v1126 = vld [vmem:[#allocation8 + $0x60] sm:$0xff]
        %v1127 = vld [vmem:[#allocation8 + $0x68] sm:$0xff]
        %v1128 = vld [vmem:[#allocation8 + $0x70] sm:$0xff]
        %v1129 = vld [vmem:[#allocation8 + $0x78] sm:$0xff]
        %v1130 = vld [vmem:[%s15] sm:$0x1]
        %v1132 = vlaneseq
        %v1133 = vshrl.u32 %v1132, 7
        %v1134 = vsub.s32 0, %v1133
        %v1135 = vrot.slane %v1130, %v1134
        %1137 = vmatprep.subr.mxu0 0.0
        %1138 = vmatpush1.msra.mxu0 %v1129
        %1139 = vmatprep.subr.mxu0 0.0
        %1140 = vmatpush1.msra.mxu0 %v1128
        %1141 = vmatprep.subr.mxu0 0.0
        %1142 = vmatpush1.msra.mxu0 %v1127
        %1143 = vmatprep.subr.mxu0 0.0
        %1144 = vmatpush1.msra.mxu0 %v1126
        %1145 = vmatprep.subr.mxu0 0.0
        %1146 = vmatpush1.msra.mxu0 %v1125
        %1147 = vmatprep.subr.mxu0 0.0
        %1148 = vmatpush1.msra.mxu0 %v1124
        %1149 = vmatprep.subr.mxu0 0.0
        %1150 = vmatpush1.msra.mxu0 %v1123
        %1151 = vmatprep.subr.mxu0 0.0
        %1152 = vmatpush1.msra.mxu0 %v1122
        %1153 = vmatprep.subr.mxu0 0.0
        %1154 = vmatpush1.msra.mxu0 %v1121
        %1155 = vmatprep.subr.mxu0 0.0
        %1156 = vmatpush1.msra.mxu0 %v1120
        %1157 = vmatprep.subr.mxu0 0.0
        %1158 = vmatpush1.msra.mxu0 %v1119
        %1159 = vmatprep.subr.mxu0 0.0
        %1160 = vmatpush1.msra.mxu0 %v1118
        %1161 = vmatprep.subr.mxu0 0.0
        %1162 = vmatpush1.msra.mxu0 %v1117
        %1163 = vmatprep.subr.mxu0 0.0
        %1164 = vmatpush1.msra.mxu0 %v1116
        %1165 = vmatprep.subr.mxu0 0.0
        %1166 = vmatpush1.msra.mxu0 %v1115
        %1167 = vmatprep.subr.mxu0 0.0
        %1168 = vmatpush1.msra.mxu0 %v1114
        %1169 = vmatprep.subr.mxu0 0.0
        %1170 = vmatpush2.msra.mxu0 0.0
        %1171 = vmatprep.subr.mxu0 0.0
        %1172 = vmatpush2.msra.mxu0 0.0
        %1173 = vmatprep.subr.mxu0 0.0
        %1174 = vmatpush2.msra.mxu0 0.0
        %1175 = vmatprep.subr.mxu0 0.0
        %1176 = vmatpush2.msra.mxu0 0.0
        %1177 = vmatprep.subr.mxu0 0.0
        %1178 = vmatpush2.msra.mxu0 0.0
        %1179 = vmatprep.subr.mxu0 0.0
        %1180 = vmatpush2.msra.mxu0 0.0
        %1181 = vmatprep.subr.mxu0 0.0
        %1182 = vmatpush2.msra.mxu0 0.0
        %1183 = vmatprep.subr.mxu0 0.0
        %1184 = vmatpush2.msra.mxu0 0.0
        %1185 = vmatprep.subr.mxu0 0.0
        %1186 = vmatpush2.msra.mxu0 0.0
        %1187 = vmatprep.subr.mxu0 0.0
        %1188 = vmatpush2.msra.mxu0 0.0
        %1189 = vmatprep.subr.mxu0 0.0
        %1190 = vmatpush2.msra.mxu0 0.0
        %1191 = vmatprep.subr.mxu0 0.0
        %1192 = vmatpush2.msra.mxu0 0.0
        %1193 = vmatprep.subr.mxu0 0.0
        %1194 = vmatpush2.msra.mxu0 0.0
        %1195 = vmatprep.subr.mxu0 0.0
        %1196 = vmatpush2.msra.mxu0 0.0
        %1197 = vmatprep.subr.mxu0 0.0
        %1198 = vmatpush2.msra.mxu0 0.0
        %1199 = vmatprep.subr.mxu0 0.0
        %1200 = vmatpush2.msra.mxu0 0.0
        %1201 = vmatprep.mubr.f32.mxu0 0.0
        %1202 = vmatmul.mubr.f32.gmra.mxu0 %v1113
        %v1203 = vpop.f32.mrf.mxu0
        %v1204 = vadd.f32 %v1135, %v1203
        %v1205 = vpop.f32.mrf.mxu0
        %1206 = vdwg.mxu0
        %v1207 = vld [vmem:[%s16] sm:$0x1]
        %v1209 = vlaneseq
        %v1210 = vshrl.u32 %v1209, 7
        %v1211 = vsub.s32 0, %v1210
        %v1212 = vrot.slane %v1207, %v1211
        %v1214 = vmul.f32 %v1204, %v1212
        %v1215 = vld [vmem:[%s17] sm:$0x1]
        %v1217 = vlaneseq
        %v1218 = vshrl.u32 %v1217, 7
        %v1219 = vsub.s32 0, %v1218
        %v1220 = vrot.slane %v1215, %v1219
        %v1222 = vadd.f32 %v1214, %v1220
        %vm1223 = vcmp.ge.f32.partialorder %v1222, 0.0
        %v1224 = vmul.f32 %v1222, 0.01
        %v1225 = vsel %vm1223, %v1222, %v1224
        %v1226 = vld [vmem:[#allocation10] sm:$0xff]
        %v1227 = vld [vmem:[#allocation10 + $0x8] sm:$0xff]
        %v1228 = vld [vmem:[#allocation10 + $0x10] sm:$0xff]
        %v1229 = vld [vmem:[#allocation10 + $0x18] sm:$0xff]
        %v1230 = vld [vmem:[#allocation10 + $0x20] sm:$0xff]
        %v1231 = vld [vmem:[#allocation10 + $0x28] sm:$0xff]
        %v1232 = vld [vmem:[#allocation10 + $0x30] sm:$0xff]
        %v1233 = vld [vmem:[#allocation10 + $0x38] sm:$0xff]
        %v1234 = vld [vmem:[#allocation10 + $0x40] sm:$0xff]
        %v1235 = vld [vmem:[#allocation10 + $0x48] sm:$0xff]
        %v1236 = vld [vmem:[#allocation10 + $0x50] sm:$0xff]
        %v1237 = vld [vmem:[#allocation10 + $0x58] sm:$0xff]
        %v1238 = vld [vmem:[#allocation10 + $0x60] sm:$0xff]
        %v1239 = vld [vmem:[#allocation10 + $0x68] sm:$0xff]
        %v1240 = vld [vmem:[#allocation10 + $0x70] sm:$0xff]
        %v1241 = vld [vmem:[#allocation10 + $0x78] sm:$0xff]
        %v1242 = vld [vmem:[%s19] sm:$0x1]
        %v1244 = vlaneseq
        %v1245 = vshrl.u32 %v1244, 7
        %v1246 = vsub.s32 0, %v1245
        %v1247 = vrot.slane %v1242, %v1246
        %1249 = vmatprep.subr.mxu0 0.0
        %1250 = vmatpush1.msra.mxu0 %v1241
        %1251 = vmatprep.subr.mxu0 0.0
        %1252 = vmatpush1.msra.mxu0 %v1240
        %1253 = vmatprep.subr.mxu0 0.0
        %1254 = vmatpush1.msra.mxu0 %v1239
        %1255 = vmatprep.subr.mxu0 0.0
        %1256 = vmatpush1.msra.mxu0 %v1238
        %1257 = vmatprep.subr.mxu0 0.0
        %1258 = vmatpush1.msra.mxu0 %v1237
        %1259 = vmatprep.subr.mxu0 0.0
        %1260 = vmatpush1.msra.mxu0 %v1236
        %1261 = vmatprep.subr.mxu0 0.0
        %1262 = vmatpush1.msra.mxu0 %v1235
        %1263 = vmatprep.subr.mxu0 0.0
        %1264 = vmatpush1.msra.mxu0 %v1234
        %1265 = vmatprep.subr.mxu0 0.0
        %1266 = vmatpush1.msra.mxu0 %v1233
        %1267 = vmatprep.subr.mxu0 0.0
        %1268 = vmatpush1.msra.mxu0 %v1232
        %1269 = vmatprep.subr.mxu0 0.0
        %1270 = vmatpush1.msra.mxu0 %v1231
        %1271 = vmatprep.subr.mxu0 0.0
        %1272 = vmatpush1.msra.mxu0 %v1230
        %1273 = vmatprep.subr.mxu0 0.0
        %1274 = vmatpush1.msra.mxu0 %v1229
        %1275 = vmatprep.subr.mxu0 0.0
        %1276 = vmatpush1.msra.mxu0 %v1228
        %1277 = vmatprep.subr.mxu0 0.0
        %1278 = vmatpush1.msra.mxu0 %v1227
        %1279 = vmatprep.subr.mxu0 0.0
        %1280 = vmatpush1.msra.mxu0 %v1226
        %1281 = vmatprep.subr.mxu0 0.0
        %1282 = vmatpush2.msra.mxu0 0.0
        %1283 = vmatprep.subr.mxu0 0.0
        %1284 = vmatpush2.msra.mxu0 0.0
        %1285 = vmatprep.subr.mxu0 0.0
        %1286 = vmatpush2.msra.mxu0 0.0
        %1287 = vmatprep.subr.mxu0 0.0
        %1288 = vmatpush2.msra.mxu0 0.0
        %1289 = vmatprep.subr.mxu0 0.0
        %1290 = vmatpush2.msra.mxu0 0.0
        %1291 = vmatprep.subr.mxu0 0.0
        %1292 = vmatpush2.msra.mxu0 0.0
        %1293 = vmatprep.subr.mxu0 0.0
        %1294 = vmatpush2.msra.mxu0 0.0
        %1295 = vmatprep.subr.mxu0 0.0
        %1296 = vmatpush2.msra.mxu0 0.0
        %1297 = vmatprep.subr.mxu0 0.0
        %1298 = vmatpush2.msra.mxu0 0.0
        %1299 = vmatprep.subr.mxu0 0.0
        %1300 = vmatpush2.msra.mxu0 0.0
        %1301 = vmatprep.subr.mxu0 0.0
        %1302 = vmatpush2.msra.mxu0 0.0
        %1303 = vmatprep.subr.mxu0 0.0
        %1304 = vmatpush2.msra.mxu0 0.0
        %1305 = vmatprep.subr.mxu0 0.0
        %1306 = vmatpush2.msra.mxu0 0.0
        %1307 = vmatprep.subr.mxu0 0.0
        %1308 = vmatpush2.msra.mxu0 0.0
        %1309 = vmatprep.subr.mxu0 0.0
        %1310 = vmatpush2.msra.mxu0 0.0
        %1311 = vmatprep.subr.mxu0 0.0
        %1312 = vmatpush2.msra.mxu0 0.0
        %1313 = vmatprep.mubr.f32.mxu0 0.0
        %1314 = vmatmul.mubr.f32.gmra.mxu0 %v1225
        %v1315 = vpop.f32.mrf.mxu0
        %v1316 = vadd.f32 %v1247, %v1315
        %v1317 = vpop.f32.mrf.mxu0
        %1318 = vdwg.mxu0
        %v1319 = vadd.f32 %v1094, %v1316
        %v1320 = vld [vmem:[#allocation11] sm:$0xff]
        %v1321 = vld [vmem:[#allocation11 + $0x8] sm:$0xff]
        %v1322 = vld [vmem:[#allocation11 + $0x10] sm:$0xff]
        %v1323 = vld [vmem:[#allocation11 + $0x18] sm:$0xff]
        %v1324 = vld [vmem:[#allocation11 + $0x20] sm:$0xff]
        %v1325 = vld [vmem:[#allocation11 + $0x28] sm:$0xff]
        %v1326 = vld [vmem:[#allocation11 + $0x30] sm:$0xff]
        %v1327 = vld [vmem:[#allocation11 + $0x38] sm:$0xff]
        %v1328 = vld [vmem:[#allocation11 + $0x40] sm:$0xff]
        %v1329 = vld [vmem:[#allocation11 + $0x48] sm:$0xff]
        %v1330 = vld [vmem:[#allocation11 + $0x50] sm:$0xff]
        %v1331 = vld [vmem:[#allocation11 + $0x58] sm:$0xff]
        %v1332 = vld [vmem:[#allocation11 + $0x60] sm:$0xff]
        %v1333 = vld [vmem:[#allocation11 + $0x68] sm:$0xff]
        %v1334 = vld [vmem:[#allocation11 + $0x70] sm:$0xff]
        %v1335 = vld [vmem:[#allocation11 + $0x78] sm:$0xff]
        %v1336 = vld [vmem:[#allocation11 + $0x80] sm:$0xff]
        %v1337 = vld [vmem:[#allocation11 + $0x88] sm:$0xff]
        %v1338 = vld [vmem:[#allocation11 + $0x90] sm:$0xff]
        %v1339 = vld [vmem:[#allocation11 + $0x98] sm:$0xff]
        %v1340 = vld [vmem:[#allocation11 + $0xa0] sm:$0xff]
        %v1341 = vld [vmem:[#allocation11 + $0xa8] sm:$0xff]
        %v1342 = vld [vmem:[#allocation11 + $0xb0] sm:$0xff]
        %v1343 = vld [vmem:[#allocation11 + $0xb8] sm:$0xff]
        %v1344 = vld [vmem:[#allocation11 + $0xc0] sm:$0xff]
        %v1345 = vld [vmem:[#allocation11 + $0xc8] sm:$0xff]
        %v1346 = vld [vmem:[#allocation11 + $0xd0] sm:$0xff]
        %v1347 = vld [vmem:[#allocation11 + $0xd8] sm:$0xff]
        %v1348 = vld [vmem:[#allocation11 + $0xe0] sm:$0xff]
        %v1349 = vld [vmem:[#allocation11 + $0xe8] sm:$0xff]
        %v1350 = vld [vmem:[#allocation11 + $0xf0] sm:$0xff]
        %v1351 = vld [vmem:[#allocation11 + $0xf8] sm:$0xff]
        %v1352 = vld [vmem:[#allocation11 + $0x100] sm:$0xff]
        %v1353 = vld [vmem:[#allocation11 + $0x108] sm:$0xff]
        %v1354 = vld [vmem:[#allocation11 + $0x110] sm:$0xff]
        %v1355 = vld [vmem:[#allocation11 + $0x118] sm:$0xff]
        %v1356 = vld [vmem:[#allocation11 + $0x120] sm:$0xff]
        %v1357 = vld [vmem:[#allocation11 + $0x128] sm:$0xff]
        %v1358 = vld [vmem:[#allocation11 + $0x130] sm:$0xff]
        %v1359 = vld [vmem:[#allocation11 + $0x138] sm:$0xff]
        %v1360 = vld [vmem:[#allocation11 + $0x140] sm:$0xff]
        %v1361 = vld [vmem:[#allocation11 + $0x148] sm:$0xff]
        %v1362 = vld [vmem:[#allocation11 + $0x150] sm:$0xff]
        %v1363 = vld [vmem:[#allocation11 + $0x158] sm:$0xff]
        %v1364 = vld [vmem:[#allocation11 + $0x160] sm:$0xff]
        %v1365 = vld [vmem:[#allocation11 + $0x168] sm:$0xff]
        %v1366 = vld [vmem:[#allocation11 + $0x170] sm:$0xff]
        %v1367 = vld [vmem:[#allocation11 + $0x178] sm:$0xff]
        %v1368 = vld [vmem:[%s21] sm:$0x7]
        %v1370 = vlaneseq
        %v1371 = vshrl.u32 %v1370, 7
        %v1372 = vsub.s32 0, %v1371
        %v1373 = vrot.slane %v1368, %v1372
        %v1374 = vlaneseq
        %v1375 = vshrl.u32 %v1374, 7
        %v1376 = vsub.s32 1, %v1375
        %v1377 = vrot.slane %v1368, %v1376
        %v1378 = vlaneseq
        %v1379 = vshrl.u32 %v1378, 7
        %v1380 = vsub.s32 2, %v1379
        %v1381 = vrot.slane %v1368, %v1380
        %1385 = vmatprep.subr.mxu0 %v1366
        %1386 = vmatpush1.msra.mxu0 %v1365
        %1387 = vmatprep.subr.mxu0 %v1363
        %1388 = vmatpush1.msra.mxu0 %v1362
        %1389 = vmatprep.subr.mxu0 %v1360
        %1390 = vmatpush1.msra.mxu0 %v1359
        %1391 = vmatprep.subr.mxu0 %v1357
        %1392 = vmatpush1.msra.mxu0 %v1356
        %1393 = vmatprep.subr.mxu0 %v1354
        %1394 = vmatpush1.msra.mxu0 %v1353
        %1395 = vmatprep.subr.mxu0 %v1351
        %1396 = vmatpush1.msra.mxu0 %v1350
        %1397 = vmatprep.subr.mxu0 %v1348
        %1398 = vmatpush1.msra.mxu0 %v1347
        %1399 = vmatprep.subr.mxu0 %v1345
        %1400 = vmatpush1.msra.mxu0 %v1344
        %1401 = vmatprep.subr.mxu0 %v1342
        %1402 = vmatpush1.msra.mxu0 %v1341
        %1403 = vmatprep.subr.mxu0 %v1339
        %1404 = vmatpush1.msra.mxu0 %v1338
        %1405 = vmatprep.subr.mxu0 %v1336
        %1406 = vmatpush1.msra.mxu0 %v1335
        %1407 = vmatprep.subr.mxu0 %v1333
        %1408 = vmatpush1.msra.mxu0 %v1332
        %1409 = vmatprep.subr.mxu0 %v1330
        %1410 = vmatpush1.msra.mxu0 %v1329
        %1411 = vmatprep.subr.mxu0 %v1327
        %1412 = vmatpush1.msra.mxu0 %v1326
        %1413 = vmatprep.subr.mxu0 %v1324
        %1414 = vmatpush1.msra.mxu0 %v1323
        %1415 = vmatprep.subr.mxu0 %v1321
        %1416 = vmatpush1.msra.mxu0 %v1320
        %1417 = vmatprep.subr.mxu0 0.0
        %1418 = vmatpush2.msra.mxu0 0.0
        %1419 = vmatprep.subr.mxu0 0.0
        %1420 = vmatpush2.msra.mxu0 0.0
        %1421 = vmatprep.subr.mxu0 0.0
        %1422 = vmatpush2.msra.mxu0 0.0
        %1423 = vmatprep.subr.mxu0 0.0
        %1424 = vmatpush2.msra.mxu0 0.0
        %1425 = vmatprep.subr.mxu0 0.0
        %1426 = vmatpush2.msra.mxu0 0.0
        %1427 = vmatprep.subr.mxu0 0.0
        %1428 = vmatpush2.msra.mxu0 0.0
        %1429 = vmatprep.subr.mxu0 0.0
        %1430 = vmatpush2.msra.mxu0 0.0
        %1431 = vmatprep.subr.mxu0 0.0
        %1432 = vmatpush2.msra.mxu0 0.0
        %1433 = vmatprep.subr.mxu0 0.0
        %1434 = vmatpush2.msra.mxu0 0.0
        %1435 = vmatprep.subr.mxu0 0.0
        %1436 = vmatpush2.msra.mxu0 0.0
        %1437 = vmatprep.subr.mxu0 0.0
        %1438 = vmatpush2.msra.mxu0 0.0
        %1439 = vmatprep.subr.mxu0 0.0
        %1440 = vmatpush2.msra.mxu0 0.0
        %1441 = vmatprep.subr.mxu0 0.0
        %1442 = vmatpush2.msra.mxu0 0.0
        %1443 = vmatprep.subr.mxu0 0.0
        %1444 = vmatpush2.msra.mxu0 0.0
        %1445 = vmatprep.subr.mxu0 0.0
        %1446 = vmatpush2.msra.mxu0 0.0
        %1447 = vmatprep.subr.mxu0 0.0
        %1448 = vmatpush2.msra.mxu0 0.0
        %1449 = vmatprep.mubr.f32.mxu0 0.0
        %1450 = vmatmul.mubr.f32.gmra.mxu0 %v1319
        %v1451 = vpop.f32.mrf.mxu0
        %v1452 = vadd.f32 %v1373, %v1451
        %v1453 = vpop.f32.mrf.mxu0
        %v1454 = vadd.f32 %v1377, %v1453
        %1455 = vdwg.mxu0
        %1456 = vmatprep.subr.mxu0 0.0
        %1457 = vmatpush1.msra.mxu0 %v1367
        %1458 = vmatprep.subr.mxu0 0.0
        %1459 = vmatpush1.msra.mxu0 %v1364
        %1460 = vmatprep.subr.mxu0 0.0
        %1461 = vmatpush1.msra.mxu0 %v1361
        %1462 = vmatprep.subr.mxu0 0.0
        %1463 = vmatpush1.msra.mxu0 %v1358
        %1464 = vmatprep.subr.mxu0 0.0
        %1465 = vmatpush1.msra.mxu0 %v1355
        %1466 = vmatprep.subr.mxu0 0.0
        %1467 = vmatpush1.msra.mxu0 %v1352
        %1468 = vmatprep.subr.mxu0 0.0
        %1469 = vmatpush1.msra.mxu0 %v1349
        %1470 = vmatprep.subr.mxu0 0.0
        %1471 = vmatpush1.msra.mxu0 %v1346
        %1472 = vmatprep.subr.mxu0 0.0
        %1473 = vmatpush1.msra.mxu0 %v1343
        %1474 = vmatprep.subr.mxu0 0.0
        %1475 = vmatpush1.msra.mxu0 %v1340
        %1476 = vmatprep.subr.mxu0 0.0
        %1477 = vmatpush1.msra.mxu0 %v1337
        %1478 = vmatprep.subr.mxu0 0.0
        %1479 = vmatpush1.msra.mxu0 %v1334
        %1480 = vmatprep.subr.mxu0 0.0
        %1481 = vmatpush1.msra.mxu0 %v1331
        %1482 = vmatprep.subr.mxu0 0.0
        %1483 = vmatpush1.msra.mxu0 %v1328
        %1484 = vmatprep.subr.mxu0 0.0
        %1485 = vmatpush1.msra.mxu0 %v1325
        %1486 = vmatprep.subr.mxu0 0.0
        %1487 = vmatpush1.msra.mxu0 %v1322
        %1488 = vmatprep.subr.mxu0 0.0
        %1489 = vmatpush2.msra.mxu0 0.0
        %1490 = vmatprep.subr.mxu0 0.0
        %1491 = vmatpush2.msra.mxu0 0.0
        %1492 = vmatprep.subr.mxu0 0.0
        %1493 = vmatpush2.msra.mxu0 0.0
        %1494 = vmatprep.subr.mxu0 0.0
        %1495 = vmatpush2.msra.mxu0 0.0
        %1496 = vmatprep.subr.mxu0 0.0
        %1497 = vmatpush2.msra.mxu0 0.0
        %1498 = vmatprep.subr.mxu0 0.0
        %1499 = vmatpush2.msra.mxu0 0.0
        %1500 = vmatprep.subr.mxu0 0.0
        %1501 = vmatpush2.msra.mxu0 0.0
        %1502 = vmatprep.subr.mxu0 0.0
        %1503 = vmatpush2.msra.mxu0 0.0
        %1504 = vmatprep.subr.mxu0 0.0
        %1505 = vmatpush2.msra.mxu0 0.0
        %1506 = vmatprep.subr.mxu0 0.0
        %1507 = vmatpush2.msra.mxu0 0.0
        %1508 = vmatprep.subr.mxu0 0.0
        %1509 = vmatpush2.msra.mxu0 0.0
        %1510 = vmatprep.subr.mxu0 0.0
        %1511 = vmatpush2.msra.mxu0 0.0
        %1512 = vmatprep.subr.mxu0 0.0
        %1513 = vmatpush2.msra.mxu0 0.0
        %1514 = vmatprep.subr.mxu0 0.0
        %1515 = vmatpush2.msra.mxu0 0.0
        %1516 = vmatprep.subr.mxu0 0.0
        %1517 = vmatpush2.msra.mxu0 0.0
        %1518 = vmatprep.subr.mxu0 0.0
        %1519 = vmatpush2.msra.mxu0 0.0
        %1520 = vmatprep.mubr.f32.mxu0 0.0
        %1521 = vmatmul.mubr.f32.gmra.mxu0 %v1319
        %v1522 = vpop.f32.mrf.mxu0
        %v1523 = vadd.f32 %v1381, %v1522
        %v1524 = vpop.f32.mrf.mxu0
        %1525 = vdwg.mxu0
        %v1526 = vxor.u32 %v1523, 2147483648
        %v1527 = vmul.f32 %v1526, 1.442695
        %v1528 = vpow.pop %v1527
        %v1529 = vadd.f32 %v1528, 1.0
        %v1530 = vrcp.pop %v1529
        %v1531 = vmul.f32 1.0, %v1530
        %v1532 = vld [vmem:[%s783] sm:$0xff]
        %v1533 = vadd.s32 %v1532, 2
        %v1534 = vadd.s32 %v1533, 1
        %vm1535 = vcmp.lt.s32.totalorder %v1534, 128
        %v1536 = vsel %vm1535, %v1534, 128
        %vm1537 = vcmp.eq.s32.totalorder %v1536, 128
        %v1538 = vsel %vm1537, 0, %v1536
        %v1539 = vand.u32 %v1538, 1
        %vm1540 = vcmp.eq.s32.totalorder %v1539, 1
        %1541 = vrot.lane.b32.xlu0 %v1454, 1
        %v1542 = vpop.permute.xlu0 %1541
        %v1543 = vsel %vm1540, 1, 0
        %1544 = vset.pattern.permute.xlu0 0
        %1545 = vperm.xlu0 %1544, %v1543
        %v1546 = vpop.permute.xlu0 %1545
        %vm1547 = vcmp.eq.s32.totalorder %v1546, 1
        %v1548 = vsel %vm1547, %v1542, %v1454
        %v1549 = vshra.s32 %v1538, 1
        %v1550 = vand.u32 %v1549, 1
        %vm1551 = vcmp.eq.s32.totalorder %v1550, 1
        %1552 = vrot.lane.b32.xlu0 %v1548, 2
        %v1553 = vpop.permute.xlu0 %1552
        %v1554 = vsel %vm1551, 1, 0
        %1555 = vset.pattern.permute.xlu0 0
        %1556 = vperm.xlu0 %1555, %v1554
        %v1557 = vpop.permute.xlu0 %1556
        %vm1558 = vcmp.eq.s32.totalorder %v1557, 1
        %v1559 = vsel %vm1558, %v1553, %v1548
        %v1560 = vshra.s32 %v1538, 2
        %v1561 = vand.u32 %v1560, 1
        %vm1562 = vcmp.eq.s32.totalorder %v1561, 1
        %1563 = vrot.lane.b32.xlu0 %v1559, 4
        %v1564 = vpop.permute.xlu0 %1563
        %v1565 = vsel %vm1562, 1, 0
        %1566 = vset.pattern.permute.xlu0 0
        %1567 = vperm.xlu0 %1566, %v1565
        %v1568 = vpop.permute.xlu0 %1567
        %vm1569 = vcmp.eq.s32.totalorder %v1568, 1
        %v1570 = vsel %vm1569, %v1564, %v1559
        %v1571 = vshra.s32 %v1538, 3
        %v1572 = vand.u32 %v1571, 1
        %vm1573 = vcmp.eq.s32.totalorder %v1572, 1
        %1574 = vrot.lane.b32.xlu0 %v1570, 8
        %v1575 = vpop.permute.xlu0 %1574
        %v1576 = vsel %vm1573, 1, 0
        %1577 = vset.pattern.permute.xlu0 0
        %1578 = vperm.xlu0 %1577, %v1576
        %v1579 = vpop.permute.xlu0 %1578
        %vm1580 = vcmp.eq.s32.totalorder %v1579, 1
        %v1581 = vsel %vm1580, %v1575, %v1570
        %v1582 = vshra.s32 %v1538, 4
        %v1583 = vand.u32 %v1582, 1
        %vm1584 = vcmp.eq.s32.totalorder %v1583, 1
        %1585 = vrot.lane.b32.xlu0 %v1581, 16
        %v1586 = vpop.permute.xlu0 %1585
        %v1587 = vsel %vm1584, 1, 0
        %1588 = vset.pattern.permute.xlu0 0
        %1589 = vperm.xlu0 %1588, %v1587
        %v1590 = vpop.permute.xlu0 %1589
        %vm1591 = vcmp.eq.s32.totalorder %v1590, 1
        %v1592 = vsel %vm1591, %v1586, %v1581
        %v1593 = vshra.s32 %v1538, 5
        %v1594 = vand.u32 %v1593, 1
        %vm1595 = vcmp.eq.s32.totalorder %v1594, 1
        %1596 = vrot.lane.b32.xlu0 %v1592, 32
        %v1597 = vpop.permute.xlu0 %1596
        %v1598 = vsel %vm1595, 1, 0
        %1599 = vset.pattern.permute.xlu0 0
        %1600 = vperm.xlu0 %1599, %v1598
        %v1601 = vpop.permute.xlu0 %1600
        %vm1602 = vcmp.eq.s32.totalorder %v1601, 1
        %v1603 = vsel %vm1602, %v1597, %v1592
        %v1604 = vshra.s32 %v1538, 6
        %v1605 = vand.u32 %v1604, 1
        %vm1606 = vcmp.eq.s32.totalorder %v1605, 1
        %1607 = vrot.lane.b32.xlu0 %v1603, 64
        %v1608 = vpop.permute.xlu0 %1607
        %v1609 = vsel %vm1606, 1, 0
        %1610 = vset.pattern.permute.xlu0 0
        %1611 = vperm.xlu0 %1610, %v1609
        %v1612 = vpop.permute.xlu0 %1611
        %vm1613 = vcmp.eq.s32.totalorder %v1612, 1
        %v1614 = vsel %vm1613, %v1608, %v1603
        %v1615 = vmul.f32 %v1452, %v1531
        %v1616 = vsub.f32 1.0, %v1531
        %v1617 = vmul.f32 %v1614, %v1616
        %v1618 = vadd.f32 %v1615, %v1617
        %v1619 = vlaneseq
        %v1620 = vand.u32 %v1619, 127
        %vm1621 = vcmp.lt.s32.totalorder %v1533, 127
        %v1622 = vsel %vm1621, %v1533, 127
        %1623 = vset.pattern.permute.xlu0 0
        %1624 = vperm.xlu0 %1623, %v1622
        %v1625 = vpop.permute.xlu0 %1624
        %vm1626 = vcmp.le.s32.totalorder %v1620, %v1625
        %v1627 = vsel %vm1626, %v1618, 0.0
        %v1628 = vmax.f32 %v1627, 0.0
        %1629 = vadd.xlane.f32.xlu0 %v1628
        %v1630 = vpop.xlane.xlu0 %1629
        %v1631 = vmax.f32 %v1630, 1e-12
        %v1632 = vrcp.pop %v1631
        %v1633 = vmul.f32 %v1628, %v1632
        %1634 = vmax.xlane.f32.xlu0 %v1633
        %v1635 = vpop.xlane.xlu0 %1634
        %vm1636 = vcmp.le.f32.partialorder %v1635, 0.0
        %vm1637 = vcmp.eq.s32.totalorder %v1620, 0
        %v1638 = vsel %vm1636, 1, 0
        %vm1639 = vcmp.eq.s32.totalorder %v1638, 1
        %vm1640 = vmand %vm1639, %vm1637
        %v1641 = vsel %vm1640, 1.0, 0.0
        %v1642 = vadd.f32 %v1633, %v1641
        %1643 = vst [vmem:[%s775] sm:$0xff] %v1642
        %s1644 = sand.u32 %s520, 1
        %s1645 = scalar_lea.sflag [#allocation4], %s1644
        %s1646 = sand.u32 %s520, 1
        %s1647 = smul.addr %s1646, 8
        %s1648 = scalar_lea.vmem [#allocation13], %s1647
        // Predicated region
        $region133: #{tpu_custom_call.1} parent=107 // pred_check
          %p1649 = pneg %p530
        $region134: #{tpu_custom_call.1} parent=107 // pred_check_branch
          %1651 = sbr.rel (%p1649) target = $region136
        $region135: #{tpu_custom_call.1} parent=107 // pred_region
          %s1653 = ssub.s32 128, 128
          %1654 = vsyncadd %s1645, %s1653
          %s1655 = smul.addr %s40, 128
          %s1656 = scalar_lea.hbm %s22, %s1655
          %s1658 = sshll.u32 %s1648, 4
          %s1659 = int_to_ptr.vmem [resolvable:$true] %s1658
          %1661 = dma.vmem_to_hbm [thread:$0]  %s1659, 128, %s1656, %s1645
        $region136: #{tpu_custom_call.1} parent=107 // pred_fallthru
          _
      $region108: #{tpu_custom_call.1} parent=5 // pred_fallthru
        _
      %p1662 = scmp.le.s32.totalorder 2, %s35
      // Predicated region
      $region137: #{tpu_custom_call.1} parent=5 // pred_check
        %p1663 = pneg %p1662
      $region138: #{tpu_custom_call.1} parent=5 // pred_check_branch
        %1665 = sbr.rel (%p1663) target = $region140
      $region139: #{tpu_custom_call.1} parent=5 // pred_region
        %s1666 = ssub.s32 %s35, 2
        // Predicated region
        $region141: #{tpu_custom_call.1} parent=139 // pred_check
          %p1667 = pneg %p536
        $region142: #{tpu_custom_call.1} parent=139 // pred_check_branch
          %1669 = sbr.rel (%p1667) target = $region144
        $region143: #{tpu_custom_call.1} parent=139 // pred_region
          %s1670 = sand.u32 %s521, 1
          %s1671 = scalar_lea.sflag [#allocation4], %s1670
          %s1672 = sand.u32 %s521, 1
          %s1673 = smul.addr %s1672, 8
          %s1674 = scalar_lea.vmem [#allocation13], %s1673
          %1675 = dma.done %s1671, 128
        $region144: #{tpu_custom_call.1} parent=139 // pred_fallthru
          _
      $region140: #{tpu_custom_call.1} parent=5 // pred_fallthru
        _
    $region6: #{tpu_custom_call.1} parent=1 // loop_footer
      %s39 = sadd.s32 1, %s35
    $region7: #{tpu_custom_call.1} parent=1 // loop_footer_branch
      %34 = sbr.rel target = $region3
    $region8: #{tpu_custom_call.1} parent=1 // loop_exit
      _
    %1676 = vsyncpa [#allocation3], 1
    %s1677 = scalar_lea.sflag [#allocation3], 1
    %1678 = vsyncpa %s1677, 1
    %1679 = vsyncpa [#allocation6], 1
    %1680 = vsyncpa [#allocation9], 1
    %1681 = vsyncpa [#allocation12], 1
    %1682 = vsyncpa [#allocation4], 1
    %s1683 = scalar_lea.sflag [#allocation4], 1
    %1684 = vsyncpa %s1683, 1

</llo_original>
